<compile_context>
chip_gen: v7x
topology: tpu7x:2x2x1
jax: 0.10.0
libtpu: 0.0.40
codegen_flags: <defaults>
</compile_context>

<pallas_src>
import math
from functools import partial

import numpy as np
import jax
import jax.numpy as jnp
from jax.experimental import pallas as pl
from jax.experimental.pallas import tpu as pltpu


def _round_up(x, m):
    return ((x + m - 1) // m) * m


# ----------------------------- fused Pallas kernel -----------------------------

def _fused_realnvp_kernel(
    # per-call data (batch-tiled)
    ctx_ref, eps_ref,
    # ConditionalPrior MLP (mu / log_sigma heads split -> no lane slicing)
    pw1_ref, pb1_ref, pw2mu_ref, pb2mu_ref, pw2ls_ref, pb2ls_ref,
    # flow layers, stacked on a leading layer axis (static Python unroll)
    w1x_ref, w1c_ref, b1_ref, w2_ref, b2_ref,
    w3s_ref, b3s_ref, w3t_ref, b3t_ref, an_ls_ref,
    # epilogue constants: permuted cumsum matrix, start-broadcast-from-context matrix
    csum_ref, tilec_ref,
    # outputs
    traj_ref, logp_ref,
    *, logp_const,
):
    f32 = jnp.float32
    bf16 = jnp.bfloat16

    ctx = ctx_ref[...]                       # (TB, Cp) f32, zero-padded lanes
    ctx_bf = ctx.astype(bf16)
    eps = eps_ref[...]                       # (TB, Dp) f32, zero-padded lanes

    # ---- ConditionalPrior: z = mu + sigma * eps, Gaussian log-prob -------------------
    h = jnp.maximum(
        jnp.dot(ctx_bf, pw1_ref[...], preferred_element_type=f32) + pb1_ref[...], 0.0)
    h_bf = h.astype(bf16)
    mu = jnp.dot(h_bf, pw2mu_ref[...], preferred_element_type=f32) + pb2mu_ref[...]
    log_sigma = jnp.dot(h_bf, pw2ls_ref[...], preferred_element_type=f32) + pb2ls_ref[...]
    v = mu + jnp.exp(log_sigma) * eps
    # Padded lanes have eps == 0 and log_sigma == 0 -> contribute exactly 0 to the sum.
    # The -0.5*log(2pi)*D_real term and the ActNorm log-det sum are folded into the
    # compile-time constant logp_const.
    logp = jnp.sum(-0.5 * eps * eps - log_sigma, axis=-1, keepdims=True) + logp_const

    # ---- flow: (ResNet coupling + folded ActNorm + folded RandomPermutation) ---------
    # Half-split, permutation and ActNorm are folded into zero-padded, pre-permuted
    # weights at init: tanh(0)=0 and t'=an_shift on the identity half, so everything here
    # is a dense whole-(TB,Dp) tile op with unmasked stores.
    n_layers = w1x_ref.shape[0]
    s_acc = jnp.zeros_like(v)
    for i in range(n_layers):                                  # static Python unroll
        v_bf = v.astype(bf16)
        hh = jnp.maximum(
            jnp.dot(v_bf, w1x_ref[i], preferred_element_type=f32)
            + jnp.dot(ctx_bf, w1c_ref[i], preferred_element_type=f32)
            + b1_ref[i], 0.0)
        hh = hh + jnp.maximum(
            jnp.dot(hh.astype(bf16), w2_ref[i], preferred_element_type=f32) + b2_ref[i],
            0.0)
        hh_bf = hh.astype(bf16)
        s = jnp.tanh(jnp.dot(hh_bf, w3s_ref[i], preferred_element_type=f32) + b3s_ref[i])
        t = jnp.dot(hh_bf, w3t_ref[i], preferred_element_type=f32) + b3t_ref[i]
        # ActNorm folded: exp(s + an_ls) == exp(s)*an_scale ; t already carries
        # t*an_scale + an_shift via the folded w3t/b3t.
        v = v * jnp.exp(s + an_ls_ref[i]) + t
        s_acc = s_acc + s                     # VPU accumulate; single XLU reduce below

    # TODO(synk): sign convention of flow_mpc SequentialFlow assumed: logpx -= logdet.
    logp = logp - jnp.sum(s_acc, axis=-1, keepdims=True)

    # ---- epilogue: cumsum over horizon (triangular matmul with the final composed
    # permutation folded into its rows) + start-state broadcast straight from ctx ------
    traj_ref[...] = (
        jnp.dot(v, csum_ref[...], preferred_element_type=f32)
        + jnp.dot(ctx, tilec_ref[...], preferred_element_type=f32))
    # Lane-dense log-prob output (broadcast across 128 lanes -> unmasked store).
    logp_ref[...] = jnp.broadcast_to(logp, logp_ref.shape)


# ----------------------------- parameters (with folding + padding) -----------------------------

def init_params(key, state_dim, action_dim, horizon, hidden_dim, flow_length):
    D = state_dim * horizon
    C = state_dim + action_dim * horizon
    d = D // 2
    H = hidden_dim
    Dp, Hp, Cp = _round_up(D, 128), _round_up(H, 128), _round_up(C, 128)
    f32, bf16 = jnp.float32, jnp.bfloat16
    keys = iter(jax.random.split(key, 4096))

    def w(shape, scale=0.05):
        return scale * jax.random.normal(next(keys), shape, f32)

    prior = {
        "w1":    jnp.zeros((Cp, Hp), f32).at[:C, :H].set(w((C, H))).astype(bf16),
        "b1":    jnp.zeros((1, Hp), f32),
        "w2_mu": jnp.zeros((Hp, Dp), f32).at[:H, :D].set(w((H, D))).astype(bf16),
        "b2_mu": jnp.zeros((1, Dp), f32),
        "w2_ls": jnp.zeros((Hp, Dp), f32).at[:H, :D].set(w((H, D))).astype(bf16),
        "b2_ls": jnp.zeros((1, Dp), f32),
    }

    # [coupling + actnorm + permutation] * flow_length, then a final coupling layer.
    # RandomPermutation is folded into the weights of the layer that consumes it; `tau`
    # tracks the composed permutation (v-column holding flow channel j is tau[j]).
    tau = np.arange(D)
    n_layers = flow_length + 1
    stk = {k: [] for k in ("w1x", "w1c", "b1", "w2", "b2",
                           "w3s", "b3s", "w3t", "b3t", "an_ls")}
    an_sum_total = 0.0

    for i in range(n_layers):
        last = (i == flow_length)
        w1x = w((d, H))
        w1c = w((C, H))
        w2 = w((H, H))
        w3s = w((H, D - d))
        b3s = jnp.zeros((1, D - d), f32)
        w3t = w((H, D - d))
        b3t = jnp.zeros((1, D - d), f32)
        # TODO(synk): ActNorm(initialized=False) is data-dependently initialized on the
        # first forward pass in flow_mpc; here it uses fixed deterministic parameters.
        an_ls_raw = jnp.zeros((1, D), f32) if last else w((1, D), 0.02)
        an_b = jnp.zeros((1, D), f32) if last else w((1, D), 0.02)
        perm = None if last else np.asarray(jax.random.permutation(next(keys), D))

        idx1 = tau[:d]    # v-columns holding the conditioner half x1
        idx2 = tau[d:]    # v-columns holding the transformed half x2

        # Fold ActNorm affine into the t-head: t' = t*exp(an_ls) + an_shift (per v-column).
        an_scale_half = jnp.exp(an_ls_raw[:, d:])                    # (1, D-d)
        w3t_fold = w3t * an_scale_half                               # scale columns
        b3t_fold_half = b3t * an_scale_half + an_b[:, d:]

        # Zero-pad the half-width coupling weights to full (Dp/Hp/Cp) so no kernel op
        # slices a vreg and all stores are dense.
        w1x_full = jnp.zeros((Dp, Hp), f32).at[idx1, :H].set(w1x)
        w1c_full = jnp.zeros((Cp, Hp), f32).at[:C, :H].set(w1c)
        w2_full = jnp.zeros((Hp, Hp), f32).at[:H, :H].set(w2)
        w3s_full = jnp.zeros((Hp, Dp), f32).at[:H, idx2].set(w3s)
        b3s_full = jnp.zeros((1, Dp), f32).at[:, idx2].set(b3s)
        w3t_full = jnp.zeros((Hp, Dp), f32).at[:H, idx2].set(w3t_fold)
        b3t_full = jnp.zeros((1, Dp), f32).at[:, tau].set(an_b)
        b3t_full = b3t_full.at[:, idx2].set(b3t_fold_half)
        an_ls_full = jnp.zeros((1, Dp), f32).at[:, tau].set(an_ls_raw)
        an_sum_total += float(jnp.sum(an_ls_raw))

        stk["w1x"].append(w1x_full.astype(bf16))
        stk["w1c"].append(w1c_full.astype(bf16))
        stk["b1"].append(jnp.zeros((1, Hp), f32))
        stk["w2"].append(w2_full.astype(bf16))
        stk["b2"].append(jnp.zeros((1, Hp), f32))
        stk["w3s"].append(w3s_full.astype(bf16))
        stk["b3s"].append(b3s_full)
        stk["w3t"].append(w3t_full.astype(bf16))
        stk["b3t"].append(b3t_full)
        stk["an_ls"].append(an_ls_full)

        if perm is not None:
            tau = tau[perm]   # compose: next layer's channel j lives in v column tau[perm[j]]

    flow = {k: jnp.stack(v, axis=0) for k, v in stk.items()}

    # Epilogue constants (built once at init):
    #   csum[j_in, j_out] = 1 iff same state component and t_in <= t_out (cumsum over
    #   horizon), rows pre-permuted by the final composed permutation so it consumes v.
    #   tile_c maps ctx (whose first state_dim lanes are start_state) to the broadcast
    #   start-state trajectory -> no separate start input.
    idx = np.arange(D)
    t_of = idx // state_dim
    s_of = idx % state_dim
    csum = ((s_of[:, None] == s_of[None, :]) &
            (t_of[:, None] <= t_of[None, :])).astype(np.float32)          # (D, D)
    csum_perm = np.zeros((Dp, Dp), np.float32)
    csum_perm[tau, :D] = csum
    tile_c = np.zeros((Cp, Dp), np.float32)
    tile_c[:state_dim, :D] = (np.arange(state_dim)[:, None] == s_of[None, :])

    logp_const = float(-0.5 * math.log(2.0 * math.pi) * D - an_sum_total)

    return {
        "state_dim": state_dim, "action_dim": action_dim, "horizon": horizon,
        "prior": prior, "flow": flow,
        "csum": jnp.asarray(csum_perm), "tile_c": jnp.asarray(tile_c),
        "logp_const": logp_const,
    }


# ----------------------------- forward -----------------------------

@partial(jax.jit, static_argnames=("horizon", "state_dim", "action_dim", "logp_const"))
def _forward_impl(weights, start_state, action, eps, *,
                  horizon, state_dim, action_dim, logp_const):
    B = start_state.shape[0]
    D = state_dim * horizon
    C = state_dim + action_dim * horizon
    prior, flow = weights["prior"], weights["flow"]
    Cp, Hp = prior["w1"].shape
    Dp = prior["w2_mu"].shape[1]
    L = flow["w1x"].shape[0]

    TB = 8                                  # batch tile (f32 sublanes); raise for big B
    Bp = _round_up(B, TB)

    # Zero-padded, lane-dense kernel inputs (padding done once per call, outside kernel).
    ctx = jnp.zeros((Bp, Cp), jnp.float32)
    ctx = ctx.at[:B, :state_dim].set(start_state)
    ctx = ctx.at[:B, state_dim:C].set(action.reshape(B, -1))
    eps_p = jnp.zeros((Bp, Dp), jnp.float32).at[:B, :D].set(eps)

    inputs = (
        ctx, eps_p,
        prior["w1"], prior["b1"], prior["w2_mu"], prior["b2_mu"],
        prior["w2_ls"], prior["b2_ls"],
        flow["w1x"], flow["w1c"], flow["b1"], flow["w2"], flow["b2"],
        flow["w3s"], flow["b3s"], flow["w3t"], flow["b3t"], flow["an_ls"],
        weights["csum"], weights["tile_c"],
    )

    def batch_spec(ncols):
        return pl.BlockSpec((TB, ncols), lambda b: (b, 0))

    def full_spec(a):
        if a.ndim == 2:
            return pl.BlockSpec(a.shape, lambda b: (0, 0))
        return pl.BlockSpec(a.shape, lambda b: (0, 0, 0))

    in_specs = [batch_spec(Cp), batch_spec(Dp)] + [full_spec(a) for a in inputs[2:]]
    out_specs = (pl.BlockSpec((TB, Dp), lambda b: (b, 0)),
                 pl.BlockSpec((TB, 128), lambda b: (b, 0)))

    flops = 2 * Bp * (Cp * Hp + 2 * Hp * Dp
                      + L * (Dp * Hp + Cp * Hp + Hp * Hp + 2 * Hp * Dp)
                      + Dp * Dp + Cp * Dp)
    transcendentals = Bp * Dp * (1 + 2 * L)
    bytes_accessed = (sum(int(np.prod(a.shape)) * np.dtype(a.dtype).itemsize
                          for a in inputs)
                      + Bp * Dp * 4 + Bp * 128 * 4)

    traj_p, logp_p = pl.pallas_call(
        partial(_fused_realnvp_kernel, logp_const=logp_const),
        grid=(Bp // TB,),
        out_shape=(jax.ShapeDtypeStruct((Bp, Dp), jnp.float32),
                   jax.ShapeDtypeStruct((Bp, 128), jnp.float32)),
        in_specs=in_specs,
        out_specs=out_specs,
        compiler_params=pltpu.CompilerParams(
            dimension_semantics=("parallel",),           # megacore batch sharding on v7x
            vmem_limit_bytes=32 * 1024 * 1024),          # explicit (v5e default is 16 MiB)
        cost_estimate=pl.CostEstimate(flops=flops, transcendentals=transcendentals,
                                      bytes_accessed=bytes_accessed),
    )(*inputs)

    traj = traj_p[:B, :D].reshape(B, horizon, state_dim)
    log_prob = logp_p[:B, 0]
    return traj, log_prob


def realnvp_model_forward(params, start_state, action, eps):
    """reverse=False branch of RealNVPModel.forward: sample a trajectory + its log-prob.

    start_state: (B, state_dim), action: (B, horizon, action_dim),
    eps: (B, state_dim*horizon) standard-normal noise (replaces torch.randn in the prior).
    Returns traj (B, horizon, state_dim) and log_prob (B,).
    """
    # TODO(synk): reverse=True (trajectory -> latent) path not implemented here.
    weights = {k: params[k] for k in ("prior", "flow", "csum", "tile_c")}
    return _forward_impl(weights, start_state, action, eps,
                         horizon=params["horizon"], state_dim=params["state_dim"],
                         action_dim=params["action_dim"],
                         logp_const=params["logp_const"])


if __name__ == "__main__":
    B = 2
    state_dim = 4
    action_dim = 2
    horizon = 8
    hidden_dim = 32
    flow_length = 2

    key = jax.random.PRNGKey(0)
    k_param, k_ss, k_act, k_eps = jax.random.split(key, 4)
    params = init_params(k_param, state_dim, action_dim, horizon, hidden_dim, flow_length)

    start_state = jax.random.normal(k_ss, (B, state_dim), jnp.float32)
    action = jax.random.normal(k_act, (B, horizon, action_dim), jnp.float32)
    eps = jax.random.normal(k_eps, (B, state_dim * horizon), jnp.float32)

    traj, log_prob = realnvp_model_forward(params, start_state, action, eps)
    traj, log_prob = jax.block_until_ready((traj, log_prob))

    assert traj.shape == (B, horizon, state_dim)
    assert log_prob.shape == (B,)
    assert bool(jnp.all(jnp.isfinite(traj))) and bool(jnp.all(jnp.isfinite(log_prob)))
    print("KERNEL_OK")
</pallas_src>

<mosaic_0001>
module attributes {stable_mosaic.version = 11 : i64} {
  func.func @_fused_realnvp_kernel(%arg0: i32, %arg1: memref<8x128xf32, #tpu.memory_space<vmem>>, %arg2: memref<8x128xf32, #tpu.memory_space<vmem>>, %arg3: memref<128x128xbf16, #tpu.memory_space<vmem>>, %arg4: memref<1x128xf32, #tpu.memory_space<vmem>>, %arg5: memref<128x128xbf16, #tpu.memory_space<vmem>>, %arg6: memref<1x128xf32, #tpu.memory_space<vmem>>, %arg7: memref<128x128xbf16, #tpu.memory_space<vmem>>, %arg8: memref<1x128xf32, #tpu.memory_space<vmem>>, %arg9: memref<3x128x128xbf16, #tpu.memory_space<vmem>>, %arg10: memref<3x128x128xbf16, #tpu.memory_space<vmem>>, %arg11: memref<3x1x128xf32, #tpu.memory_space<vmem>>, %arg12: memref<3x128x128xbf16, #tpu.memory_space<vmem>>, %arg13: memref<3x1x128xf32, #tpu.memory_space<vmem>>, %arg14: memref<3x128x128xbf16, #tpu.memory_space<vmem>>, %arg15: memref<3x1x128xf32, #tpu.memory_space<vmem>>, %arg16: memref<3x128x128xbf16, #tpu.memory_space<vmem>>, %arg17: memref<3x1x128xf32, #tpu.memory_space<vmem>>, %arg18: memref<3x1x128xf32, #tpu.memory_space<vmem>>, %arg19: memref<128x128xf32, #tpu.memory_space<vmem>>, %arg20: memref<128x128xf32, #tpu.memory_space<vmem>>, %arg21: memref<8x128xf32, #tpu.memory_space<vmem>>, %arg22: memref<8x128xf32, #tpu.memory_space<vmem>>) attributes {dimension_semantics = [#tpu.dimension_semantics<parallel>], iteration_bounds = array<i64: 1>, scalar_prefetch = 0 : i64, scratch_operands = 0 : i64, tpu.core_type = #tpu.core_type<tc>, window_params = [{transform_indices = @transform_0, window_bounds = array<i64: 8, 128>}, {transform_indices = @transform_1, window_bounds = array<i64: 8, 128>}, {pipeline_mode = #tpu.pipeline_mode<synchronous>, transform_indices = @transform_2, window_bounds = array<i64: 128, 128>}, {pipeline_mode = #tpu.pipeline_mode<synchronous>, transform_indices = @transform_3, window_bounds = array<i64: 1, 128>}, {pipeline_mode = #tpu.pipeline_mode<synchronous>, transform_indices = @transform_4, window_bounds = array<i64: 128, 128>}, {pipeline_mode = #tpu.pipeline_mode<synchronous>, transform_indices = @transform_5, window_bounds = array<i64: 1, 128>}, {pipeline_mode = #tpu.pipeline_mode<synchronous>, transform_indices = @transform_6, window_bounds = array<i64: 128, 128>}, {pipeline_mode = #tpu.pipeline_mode<synchronous>, transform_indices = @transform_7, window_bounds = array<i64: 1, 128>}, {pipeline_mode = #tpu.pipeline_mode<synchronous>, transform_indices = @transform_8, window_bounds = array<i64: 3, 128, 128>}, {pipeline_mode = #tpu.pipeline_mode<synchronous>, transform_indices = @transform_9, window_bounds = array<i64: 3, 128, 128>}, {pipeline_mode = #tpu.pipeline_mode<synchronous>, transform_indices = @transform_10, window_bounds = array<i64: 3, 1, 128>}, {pipeline_mode = #tpu.pipeline_mode<synchronous>, transform_indices = @transform_11, window_bounds = array<i64: 3, 128, 128>}, {pipeline_mode = #tpu.pipeline_mode<synchronous>, transform_indices = @transform_12, window_bounds = array<i64: 3, 1, 128>}, {pipeline_mode = #tpu.pipeline_mode<synchronous>, transform_indices = @transform_13, window_bounds = array<i64: 3, 128, 128>}, {pipeline_mode = #tpu.pipeline_mode<synchronous>, transform_indices = @transform_14, window_bounds = array<i64: 3, 1, 128>}, {pipeline_mode = #tpu.pipeline_mode<synchronous>, transform_indices = @transform_15, window_bounds = array<i64: 3, 128, 128>}, {pipeline_mode = #tpu.pipeline_mode<synchronous>, transform_indices = @transform_16, window_bounds = array<i64: 3, 1, 128>}, {pipeline_mode = #tpu.pipeline_mode<synchronous>, transform_indices = @transform_17, window_bounds = array<i64: 3, 1, 128>}, {pipeline_mode = #tpu.pipeline_mode<synchronous>, transform_indices = @transform_18, window_bounds = array<i64: 128, 128>}, {pipeline_mode = #tpu.pipeline_mode<synchronous>, transform_indices = @transform_19, window_bounds = array<i64: 128, 128>}, {transform_indices = @transform_20, window_bounds = array<i64: 8, 128>}, {transform_indices = @transform_21, window_bounds = array<i64: 8, 128>}]} {
    %c0 = arith.constant 0 : index
    %c0_0 = arith.constant 0 : index
    %0 = vector.load %arg1[%c0, %c0_0] : memref<8x128xf32, #tpu.memory_space<vmem>>, vector<8x128xf32>
    %1 = arith.truncf %0 : vector<8x128xf32> to vector<8x128xbf16>
    %c0_1 = arith.constant 0 : index
    %c0_2 = arith.constant 0 : index
    %2 = vector.load %arg2[%c0_1, %c0_2] : memref<8x128xf32, #tpu.memory_space<vmem>>, vector<8x128xf32>
    %c0_3 = arith.constant 0 : index
    %c0_4 = arith.constant 0 : index
    %3 = vector.load %arg3[%c0_3, %c0_4] : memref<128x128xbf16, #tpu.memory_space<vmem>>, vector<128x128xbf16>
    %cst = arith.constant dense<0.000000e+00> : vector<8x128xf32>
    %4 = tpu.matmul %1, %3, %cst {dimension_numbers = #tpu.dot_dimension_numbers<[1], [0], [0], [1], [0, 0, 1, 1], [], []>} : vector<8x128xbf16>, vector<128x128xbf16>, vector<8x128xf32> -> vector<8x128xf32>
    %c0_5 = arith.constant 0 : index
    %c0_6 = arith.constant 0 : index
    %5 = vector.load %arg4[%c0_5, %c0_6] : memref<1x128xf32, #tpu.memory_space<vmem>>, vector<1x128xf32>
    %6 = vector.broadcast %5 : vector<1x128xf32> to vector<8x128xf32>
    %7 = arith.addf %4, %6 : vector<8x128xf32>
    %cst_7 = arith.constant 0.000000e+00 : f32
    %8 = vector.broadcast %cst_7 : f32 to vector<8x128xf32>
    %9 = arith.maximumf %7, %8 : vector<8x128xf32>
    %10 = arith.truncf %9 : vector<8x128xf32> to vector<8x128xbf16>
    %c0_8 = arith.constant 0 : index
    %c0_9 = arith.constant 0 : index
    %11 = vector.load %arg5[%c0_8, %c0_9] : memref<128x128xbf16, #tpu.memory_space<vmem>>, vector<128x128xbf16>
    %cst_10 = arith.constant dense<0.000000e+00> : vector<8x128xf32>
    %12 = tpu.matmul %10, %11, %cst_10 {dimension_numbers = #tpu.dot_dimension_numbers<[1], [0], [0], [1], [0, 0, 1, 1], [], []>} : vector<8x128xbf16>, vector<128x128xbf16>, vector<8x128xf32> -> vector<8x128xf32>
    %c0_11 = arith.constant 0 : index
    %c0_12 = arith.constant 0 : index
    %13 = vector.load %arg6[%c0_11, %c0_12] : memref<1x128xf32, #tpu.memory_space<vmem>>, vector<1x128xf32>
    %14 = vector.broadcast %13 : vector<1x128xf32> to vector<8x128xf32>
    %15 = arith.addf %12, %14 : vector<8x128xf32>
    %c0_13 = arith.constant 0 : index
    %c0_14 = arith.constant 0 : index
    %16 = vector.load %arg7[%c0_13, %c0_14] : memref<128x128xbf16, #tpu.memory_space<vmem>>, vector<128x128xbf16>
    %cst_15 = arith.constant dense<0.000000e+00> : vector<8x128xf32>
    %17 = tpu.matmul %10, %16, %cst_15 {dimension_numbers = #tpu.dot_dimension_numbers<[1], [0], [0], [1], [0, 0, 1, 1], [], []>} : vector<8x128xbf16>, vector<128x128xbf16>, vector<8x128xf32> -> vector<8x128xf32>
    %c0_16 = arith.constant 0 : index
    %c0_17 = arith.constant 0 : index
    %18 = vector.load %arg8[%c0_16, %c0_17] : memref<1x128xf32, #tpu.memory_space<vmem>>, vector<1x128xf32>
    %19 = vector.broadcast %18 : vector<1x128xf32> to vector<8x128xf32>
    %20 = arith.addf %17, %19 : vector<8x128xf32>
    %21 = math.exp %20 : vector<8x128xf32>
    %22 = arith.mulf %21, %2 : vector<8x128xf32>
    %23 = arith.addf %15, %22 : vector<8x128xf32>
    %cst_18 = arith.constant -5.000000e-01 : f32
    %24 = vector.broadcast %cst_18 : f32 to vector<8x128xf32>
    %25 = arith.mulf %24, %2 : vector<8x128xf32>
    %26 = arith.mulf %25, %2 : vector<8x128xf32>
    %27 = arith.subf %26, %20 : vector<8x128xf32>
    %cst_19 = arith.constant dense<0.000000e+00> : vector<8xf32>
    %28 = vector.multi_reduction <add>, %27, %cst_19 [1] : vector<8x128xf32> to vector<8xf32>
    %29 = vector.shape_cast %28 : vector<8xf32> to vector<8x1xf32>
    %cst_20 = arith.constant -29.5840988 : f32
    %30 = vector.broadcast %cst_20 : f32 to vector<8x1xf32>
    %31 = arith.addf %29, %30 : vector<8x1xf32>
    %cst_21 = arith.constant 0.000000e+00 : f32
    %32 = vector.broadcast %cst_21 : f32 to vector<8x128xf32>
    %33 = arith.truncf %23 : vector<8x128xf32> to vector<8x128xbf16>
    %c0_22 = arith.constant 0 : index
    %c0_23 = arith.constant 0 : index
    %c0_24 = arith.constant 0 : index
    %34 = vector.load %arg9[%c0_22, %c0_23, %c0_24] : memref<3x128x128xbf16, #tpu.memory_space<vmem>>, vector<1x128x128xbf16>
    %35 = vector.shape_cast %34 : vector<1x128x128xbf16> to vector<128x128xbf16>
    %cst_25 = arith.constant dense<0.000000e+00> : vector<8x128xf32>
    %36 = tpu.matmul %33, %35, %cst_25 {dimension_numbers = #tpu.dot_dimension_numbers<[1], [0], [0], [1], [0, 0, 1, 1], [], []>} : vector<8x128xbf16>, vector<128x128xbf16>, vector<8x128xf32> -> vector<8x128xf32>
    %c0_26 = arith.constant 0 : index
    %c0_27 = arith.constant 0 : index
    %c0_28 = arith.constant 0 : index
    %37 = vector.load %arg10[%c0_26, %c0_27, %c0_28] : memref<3x128x128xbf16, #tpu.memory_space<vmem>>, vector<1x128x128xbf16>
    %38 = vector.shape_cast %37 : vector<1x128x128xbf16> to vector<128x128xbf16>
    %cst_29 = arith.constant dense<0.000000e+00> : vector<8x128xf32>
    %39 = tpu.matmul %1, %38, %cst_29 {dimension_numbers = #tpu.dot_dimension_numbers<[1], [0], [0], [1], [0, 0, 1, 1], [], []>} : vector<8x128xbf16>, vector<128x128xbf16>, vector<8x128xf32> -> vector<8x128xf32>
    %40 = arith.addf %36, %39 : vector<8x128xf32>
    %c0_30 = arith.constant 0 : index
    %c0_31 = arith.constant 0 : index
    %c0_32 = arith.constant 0 : index
    %41 = vector.load %arg11[%c0_30, %c0_31, %c0_32] : memref<3x1x128xf32, #tpu.memory_space<vmem>>, vector<1x1x128xf32>
    %42 = vector.shape_cast %41 : vector<1x1x128xf32> to vector<1x128xf32>
    %43 = vector.broadcast %42 : vector<1x128xf32> to vector<8x128xf32>
    %44 = arith.addf %40, %43 : vector<8x128xf32>
    %cst_33 = arith.constant 0.000000e+00 : f32
    %45 = vector.broadcast %cst_33 : f32 to vector<8x128xf32>
    %46 = arith.maximumf %44, %45 : vector<8x128xf32>
    %47 = arith.truncf %46 : vector<8x128xf32> to vector<8x128xbf16>
    %c0_34 = arith.constant 0 : index
    %c0_35 = arith.constant 0 : index
    %c0_36 = arith.constant 0 : index
    %48 = vector.load %arg12[%c0_34, %c0_35, %c0_36] : memref<3x128x128xbf16, #tpu.memory_space<vmem>>, vector<1x128x128xbf16>
    %49 = vector.shape_cast %48 : vector<1x128x128xbf16> to vector<128x128xbf16>
    %cst_37 = arith.constant dense<0.000000e+00> : vector<8x128xf32>
    %50 = tpu.matmul %47, %49, %cst_37 {dimension_numbers = #tpu.dot_dimension_numbers<[1], [0], [0], [1], [0, 0, 1, 1], [], []>} : vector<8x128xbf16>, vector<128x128xbf16>, vector<8x128xf32> -> vector<8x128xf32>
    %c0_38 = arith.constant 0 : index
    %c0_39 = arith.constant 0 : index
    %c0_40 = arith.constant 0 : index
    %51 = vector.load %arg13[%c0_38, %c0_39, %c0_40] : memref<3x1x128xf32, #tpu.memory_space<vmem>>, vector<1x1x128xf32>
    %52 = vector.shape_cast %51 : vector<1x1x128xf32> to vector<1x128xf32>
    %53 = vector.broadcast %52 : vector<1x128xf32> to vector<8x128xf32>
    %54 = arith.addf %50, %53 : vector<8x128xf32>
    %cst_41 = arith.constant 0.000000e+00 : f32
    %55 = vector.broadcast %cst_41 : f32 to vector<8x128xf32>
    %56 = arith.maximumf %54, %55 : vector<8x128xf32>
    %57 = arith.addf %46, %56 : vector<8x128xf32>
    %58 = arith.truncf %57 : vector<8x128xf32> to vector<8x128xbf16>
    %c0_42 = arith.constant 0 : index
    %c0_43 = arith.constant 0 : index
    %c0_44 = arith.constant 0 : index
    %59 = vector.load %arg14[%c0_42, %c0_43, %c0_44] : memref<3x128x128xbf16, #tpu.memory_space<vmem>>, vector<1x128x128xbf16>
    %60 = vector.shape_cast %59 : vector<1x128x128xbf16> to vector<128x128xbf16>
    %cst_45 = arith.constant dense<0.000000e+00> : vector<8x128xf32>
    %61 = tpu.matmul %58, %60, %cst_45 {dimension_numbers = #tpu.dot_dimension_numbers<[1], [0], [0], [1], [0, 0, 1, 1], [], []>} : vector<8x128xbf16>, vector<128x128xbf16>, vector<8x128xf32> -> vector<8x128xf32>
    %c0_46 = arith.constant 0 : index
    %c0_47 = arith.constant 0 : index
    %c0_48 = arith.constant 0 : index
    %62 = vector.load %arg15[%c0_46, %c0_47, %c0_48] : memref<3x1x128xf32, #tpu.memory_space<vmem>>, vector<1x1x128xf32>
    %63 = vector.shape_cast %62 : vector<1x1x128xf32> to vector<1x128xf32>
    %64 = vector.broadcast %63 : vector<1x128xf32> to vector<8x128xf32>
    %65 = arith.addf %61, %64 : vector<8x128xf32>
    %66 = math.tanh %65 : vector<8x128xf32>
    %c0_49 = arith.constant 0 : index
    %c0_50 = arith.constant 0 : index
    %c0_51 = arith.constant 0 : index
    %67 = vector.load %arg16[%c0_49, %c0_50, %c0_51] : memref<3x128x128xbf16, #tpu.memory_space<vmem>>, vector<1x128x128xbf16>
    %68 = vector.shape_cast %67 : vector<1x128x128xbf16> to vector<128x128xbf16>
    %cst_52 = arith.constant dense<0.000000e+00> : vector<8x128xf32>
    %69 = tpu.matmul %58, %68, %cst_52 {dimension_numbers = #tpu.dot_dimension_numbers<[1], [0], [0], [1], [0, 0, 1, 1], [], []>} : vector<8x128xbf16>, vector<128x128xbf16>, vector<8x128xf32> -> vector<8x128xf32>
    %c0_53 = arith.constant 0 : index
    %c0_54 = arith.constant 0 : index
    %c0_55 = arith.constant 0 : index
    %70 = vector.load %arg17[%c0_53, %c0_54, %c0_55] : memref<3x1x128xf32, #tpu.memory_space<vmem>>, vector<1x1x128xf32>
    %71 = vector.shape_cast %70 : vector<1x1x128xf32> to vector<1x128xf32>
    %72 = vector.broadcast %71 : vector<1x128xf32> to vector<8x128xf32>
    %73 = arith.addf %69, %72 : vector<8x128xf32>
    %c0_56 = arith.constant 0 : index
    %c0_57 = arith.constant 0 : index
    %c0_58 = arith.constant 0 : index
    %74 = vector.load %arg18[%c0_56, %c0_57, %c0_58] : memref<3x1x128xf32, #tpu.memory_space<vmem>>, vector<1x1x128xf32>
    %75 = vector.shape_cast %74 : vector<1x1x128xf32> to vector<1x128xf32>
    %76 = vector.broadcast %75 : vector<1x128xf32> to vector<8x128xf32>
    %77 = arith.addf %66, %76 : vector<8x128xf32>
    %78 = math.exp %77 : vector<8x128xf32>
    %79 = arith.mulf %23, %78 : vector<8x128xf32>
    %80 = arith.addf %79, %73 : vector<8x128xf32>
    %81 = arith.addf %32, %66 : vector<8x128xf32>
    %82 = arith.truncf %80 : vector<8x128xf32> to vector<8x128xbf16>
    %c1 = arith.constant 1 : index
    %c0_59 = arith.constant 0 : index
    %c0_60 = arith.constant 0 : index
    %83 = vector.load %arg9[%c1, %c0_59, %c0_60] : memref<3x128x128xbf16, #tpu.memory_space<vmem>>, vector<1x128x128xbf16>
    %84 = vector.shape_cast %83 : vector<1x128x128xbf16> to vector<128x128xbf16>
    %cst_61 = arith.constant dense<0.000000e+00> : vector<8x128xf32>
    %85 = tpu.matmul %82, %84, %cst_61 {dimension_numbers = #tpu.dot_dimension_numbers<[1], [0], [0], [1], [0, 0, 1, 1], [], []>} : vector<8x128xbf16>, vector<128x128xbf16>, vector<8x128xf32> -> vector<8x128xf32>
    %c1_62 = arith.constant 1 : index
    %c0_63 = arith.constant 0 : index
    %c0_64 = arith.constant 0 : index
    %86 = vector.load %arg10[%c1_62, %c0_63, %c0_64] : memref<3x128x128xbf16, #tpu.memory_space<vmem>>, vector<1x128x128xbf16>
    %87 = vector.shape_cast %86 : vector<1x128x128xbf16> to vector<128x128xbf16>
    %cst_65 = arith.constant dense<0.000000e+00> : vector<8x128xf32>
    %88 = tpu.matmul %1, %87, %cst_65 {dimension_numbers = #tpu.dot_dimension_numbers<[1], [0], [0], [1], [0, 0, 1, 1], [], []>} : vector<8x128xbf16>, vector<128x128xbf16>, vector<8x128xf32> -> vector<8x128xf32>
    %89 = arith.addf %85, %88 : vector<8x128xf32>
    %c1_66 = arith.constant 1 : index
    %c0_67 = arith.constant 0 : index
    %c0_68 = arith.constant 0 : index
    %90 = vector.load %arg11[%c1_66, %c0_67, %c0_68] : memref<3x1x128xf32, #tpu.memory_space<vmem>>, vector<1x1x128xf32>
    %91 = vector.shape_cast %90 : vector<1x1x128xf32> to vector<1x128xf32>
    %92 = vector.broadcast %91 : vector<1x128xf32> to vector<8x128xf32>
    %93 = arith.addf %89, %92 : vector<8x128xf32>
    %cst_69 = arith.constant 0.000000e+00 : f32
    %94 = vector.broadcast %cst_69 : f32 to vector<8x128xf32>
    %95 = arith.maximumf %93, %94 : vector<8x128xf32>
    %96 = arith.truncf %95 : vector<8x128xf32> to vector<8x128xbf16>
    %c1_70 = arith.constant 1 : index
    %c0_71 = arith.constant 0 : index
    %c0_72 = arith.constant 0 : index
    %97 = vector.load %arg12[%c1_70, %c0_71, %c0_72] : memref<3x128x128xbf16, #tpu.memory_space<vmem>>, vector<1x128x128xbf16>
    %98 = vector.shape_cast %97 : vector<1x128x128xbf16> to vector<128x128xbf16>
    %cst_73 = arith.constant dense<0.000000e+00> : vector<8x128xf32>
    %99 = tpu.matmul %96, %98, %cst_73 {dimension_numbers = #tpu.dot_dimension_numbers<[1], [0], [0], [1], [0, 0, 1, 1], [], []>} : vector<8x128xbf16>, vector<128x128xbf16>, vector<8x128xf32> -> vector<8x128xf32>
    %c1_74 = arith.constant 1 : index
    %c0_75 = arith.constant 0 : index
    %c0_76 = arith.constant 0 : index
    %100 = vector.load %arg13[%c1_74, %c0_75, %c0_76] : memref<3x1x128xf32, #tpu.memory_space<vmem>>, vector<1x1x128xf32>
    %101 = vector.shape_cast %100 : vector<1x1x128xf32> to vector<1x128xf32>
    %102 = vector.broadcast %101 : vector<1x128xf32> to vector<8x128xf32>
    %103 = arith.addf %99, %102 : vector<8x128xf32>
    %cst_77 = arith.constant 0.000000e+00 : f32
    %104 = vector.broadcast %cst_77 : f32 to vector<8x128xf32>
    %105 = arith.maximumf %103, %104 : vector<8x128xf32>
    %106 = arith.addf %95, %105 : vector<8x128xf32>
    %107 = arith.truncf %106 : vector<8x128xf32> to vector<8x128xbf16>
    %c1_78 = arith.constant 1 : index
    %c0_79 = arith.constant 0 : index
    %c0_80 = arith.constant 0 : index
    %108 = vector.load %arg14[%c1_78, %c0_79, %c0_80] : memref<3x128x128xbf16, #tpu.memory_space<vmem>>, vector<1x128x128xbf16>
    %109 = vector.shape_cast %108 : vector<1x128x128xbf16> to vector<128x128xbf16>
    %cst_81 = arith.constant dense<0.000000e+00> : vector<8x128xf32>
    %110 = tpu.matmul %107, %109, %cst_81 {dimension_numbers = #tpu.dot_dimension_numbers<[1], [0], [0], [1], [0, 0, 1, 1], [], []>} : vector<8x128xbf16>, vector<128x128xbf16>, vector<8x128xf32> -> vector<8x128xf32>
    %c1_82 = arith.constant 1 : index
    %c0_83 = arith.constant 0 : index
    %c0_84 = arith.constant 0 : index
    %111 = vector.load %arg15[%c1_82, %c0_83, %c0_84] : memref<3x1x128xf32, #tpu.memory_space<vmem>>, vector<1x1x128xf32>
    %112 = vector.shape_cast %111 : vector<1x1x128xf32> to vector<1x128xf32>
    %113 = vector.broadcast %112 : vector<1x128xf32> to vector<8x128xf32>
    %114 = arith.addf %110, %113 : vector<8x128xf32>
    %115 = math.tanh %114 : vector<8x128xf32>
    %c1_85 = arith.constant 1 : index
    %c0_86 = arith.constant 0 : index
    %c0_87 = arith.constant 0 : index
    %116 = vector.load %arg16[%c1_85, %c0_86, %c0_87] : memref<3x128x128xbf16, #tpu.memory_space<vmem>>, vector<1x128x128xbf16>
    %117 = vector.shape_cast %116 : vector<1x128x128xbf16> to vector<128x128xbf16>
    %cst_88 = arith.constant dense<0.000000e+00> : vector<8x128xf32>
    %118 = tpu.matmul %107, %117, %cst_88 {dimension_numbers = #tpu.dot_dimension_numbers<[1], [0], [0], [1], [0, 0, 1, 1], [], []>} : vector<8x128xbf16>, vector<128x128xbf16>, vector<8x128xf32> -> vector<8x128xf32>
    %c1_89 = arith.constant 1 : index
    %c0_90 = arith.constant 0 : index
    %c0_91 = arith.constant 0 : index
    %119 = vector.load %arg17[%c1_89, %c0_90, %c0_91] : memref<3x1x128xf32, #tpu.memory_space<vmem>>, vector<1x1x128xf32>
    %120 = vector.shape_cast %119 : vector<1x1x128xf32> to vector<1x128xf32>
    %121 = vector.broadcast %120 : vector<1x128xf32> to vector<8x128xf32>
    %122 = arith.addf %118, %121 : vector<8x128xf32>
    %c1_92 = arith.constant 1 : index
    %c0_93 = arith.constant 0 : index
    %c0_94 = arith.constant 0 : index
    %123 = vector.load %arg18[%c1_92, %c0_93, %c0_94] : memref<3x1x128xf32, #tpu.memory_space<vmem>>, vector<1x1x128xf32>
    %124 = vector.shape_cast %123 : vector<1x1x128xf32> to vector<1x128xf32>
    %125 = vector.broadcast %124 : vector<1x128xf32> to vector<8x128xf32>
    %126 = arith.addf %115, %125 : vector<8x128xf32>
    %127 = math.exp %126 : vector<8x128xf32>
    %128 = arith.mulf %80, %127 : vector<8x128xf32>
    %129 = arith.addf %128, %122 : vector<8x128xf32>
    %130 = arith.addf %81, %115 : vector<8x128xf32>
    %131 = arith.truncf %129 : vector<8x128xf32> to vector<8x128xbf16>
    %c2 = arith.constant 2 : index
    %c0_95 = arith.constant 0 : index
    %c0_96 = arith.constant 0 : index
    %132 = vector.load %arg9[%c2, %c0_95, %c0_96] : memref<3x128x128xbf16, #tpu.memory_space<vmem>>, vector<1x128x128xbf16>
    %133 = vector.shape_cast %132 : vector<1x128x128xbf16> to vector<128x128xbf16>
    %cst_97 = arith.constant dense<0.000000e+00> : vector<8x128xf32>
    %134 = tpu.matmul %131, %133, %cst_97 {dimension_numbers = #tpu.dot_dimension_numbers<[1], [0], [0], [1], [0, 0, 1, 1], [], []>} : vector<8x128xbf16>, vector<128x128xbf16>, vector<8x128xf32> -> vector<8x128xf32>
    %c2_98 = arith.constant 2 : index
    %c0_99 = arith.constant 0 : index
    %c0_100 = arith.constant 0 : index
    %135 = vector.load %arg10[%c2_98, %c0_99, %c0_100] : memref<3x128x128xbf16, #tpu.memory_space<vmem>>, vector<1x128x128xbf16>
    %136 = vector.shape_cast %135 : vector<1x128x128xbf16> to vector<128x128xbf16>
    %cst_101 = arith.constant dense<0.000000e+00> : vector<8x128xf32>
    %137 = tpu.matmul %1, %136, %cst_101 {dimension_numbers = #tpu.dot_dimension_numbers<[1], [0], [0], [1], [0, 0, 1, 1], [], []>} : vector<8x128xbf16>, vector<128x128xbf16>, vector<8x128xf32> -> vector<8x128xf32>
    %138 = arith.addf %134, %137 : vector<8x128xf32>
    %c2_102 = arith.constant 2 : index
    %c0_103 = arith.constant 0 : index
    %c0_104 = arith.constant 0 : index
    %139 = vector.load %arg11[%c2_102, %c0_103, %c0_104] : memref<3x1x128xf32, #tpu.memory_space<vmem>>, vector<1x1x128xf32>
    %140 = vector.shape_cast %139 : vector<1x1x128xf32> to vector<1x128xf32>
    %141 = vector.broadcast %140 : vector<1x128xf32> to vector<8x128xf32>
    %142 = arith.addf %138, %141 : vector<8x128xf32>
    %cst_105 = arith.constant 0.000000e+00 : f32
    %143 = vector.broadcast %cst_105 : f32 to vector<8x128xf32>
    %144 = arith.maximumf %142, %143 : vector<8x128xf32>
    %145 = arith.truncf %144 : vector<8x128xf32> to vector<8x128xbf16>
    %c2_106 = arith.constant 2 : index
    %c0_107 = arith.constant 0 : index
    %c0_108 = arith.constant 0 : index
    %146 = vector.load %arg12[%c2_106, %c0_107, %c0_108] : memref<3x128x128xbf16, #tpu.memory_space<vmem>>, vector<1x128x128xbf16>
    %147 = vector.shape_cast %146 : vector<1x128x128xbf16> to vector<128x128xbf16>
    %cst_109 = arith.constant dense<0.000000e+00> : vector<8x128xf32>
    %148 = tpu.matmul %145, %147, %cst_109 {dimension_numbers = #tpu.dot_dimension_numbers<[1], [0], [0], [1], [0, 0, 1, 1], [], []>} : vector<8x128xbf16>, vector<128x128xbf16>, vector<8x128xf32> -> vector<8x128xf32>
    %c2_110 = arith.constant 2 : index
    %c0_111 = arith.constant 0 : index
    %c0_112 = arith.constant 0 : index
    %149 = vector.load %arg13[%c2_110, %c0_111, %c0_112] : memref<3x1x128xf32, #tpu.memory_space<vmem>>, vector<1x1x128xf32>
    %150 = vector.shape_cast %149 : vector<1x1x128xf32> to vector<1x128xf32>
    %151 = vector.broadcast %150 : vector<1x128xf32> to vector<8x128xf32>
    %152 = arith.addf %148, %151 : vector<8x128xf32>
    %cst_113 = arith.constant 0.000000e+00 : f32
    %153 = vector.broadcast %cst_113 : f32 to vector<8x128xf32>
    %154 = arith.maximumf %152, %153 : vector<8x128xf32>
    %155 = arith.addf %144, %154 : vector<8x128xf32>
    %156 = arith.truncf %155 : vector<8x128xf32> to vector<8x128xbf16>
    %c2_114 = arith.constant 2 : index
    %c0_115 = arith.constant 0 : index
    %c0_116 = arith.constant 0 : index
    %157 = vector.load %arg14[%c2_114, %c0_115, %c0_116] : memref<3x128x128xbf16, #tpu.memory_space<vmem>>, vector<1x128x128xbf16>
    %158 = vector.shape_cast %157 : vector<1x128x128xbf16> to vector<128x128xbf16>
    %cst_117 = arith.constant dense<0.000000e+00> : vector<8x128xf32>
    %159 = tpu.matmul %156, %158, %cst_117 {dimension_numbers = #tpu.dot_dimension_numbers<[1], [0], [0], [1], [0, 0, 1, 1], [], []>} : vector<8x128xbf16>, vector<128x128xbf16>, vector<8x128xf32> -> vector<8x128xf32>
    %c2_118 = arith.constant 2 : index
    %c0_119 = arith.constant 0 : index
    %c0_120 = arith.constant 0 : index
    %160 = vector.load %arg15[%c2_118, %c0_119, %c0_120] : memref<3x1x128xf32, #tpu.memory_space<vmem>>, vector<1x1x128xf32>
    %161 = vector.shape_cast %160 : vector<1x1x128xf32> to vector<1x128xf32>
    %162 = vector.broadcast %161 : vector<1x128xf32> to vector<8x128xf32>
    %163 = arith.addf %159, %162 : vector<8x128xf32>
    %164 = math.tanh %163 : vector<8x128xf32>
    %c2_121 = arith.constant 2 : index
    %c0_122 = arith.constant 0 : index
    %c0_123 = arith.constant 0 : index
    %165 = vector.load %arg16[%c2_121, %c0_122, %c0_123] : memref<3x128x128xbf16, #tpu.memory_space<vmem>>, vector<1x128x128xbf16>
    %166 = vector.shape_cast %165 : vector<1x128x128xbf16> to vector<128x128xbf16>
    %cst_124 = arith.constant dense<0.000000e+00> : vector<8x128xf32>
    %167 = tpu.matmul %156, %166, %cst_124 {dimension_numbers = #tpu.dot_dimension_numbers<[1], [0], [0], [1], [0, 0, 1, 1], [], []>} : vector<8x128xbf16>, vector<128x128xbf16>, vector<8x128xf32> -> vector<8x128xf32>
    %c2_125 = arith.constant 2 : index
    %c0_126 = arith.constant 0 : index
    %c0_127 = arith.constant 0 : index
    %168 = vector.load %arg17[%c2_125, %c0_126, %c0_127] : memref<3x1x128xf32, #tpu.memory_space<vmem>>, vector<1x1x128xf32>
    %169 = vector.shape_cast %168 : vector<1x1x128xf32> to vector<1x128xf32>
    %170 = vector.broadcast %169 : vector<1x128xf32> to vector<8x128xf32>
    %171 = arith.addf %167, %170 : vector<8x128xf32>
    %c2_128 = arith.constant 2 : index
    %c0_129 = arith.constant 0 : index
    %c0_130 = arith.constant 0 : index
    %172 = vector.load %arg18[%c2_128, %c0_129, %c0_130] : memref<3x1x128xf32, #tpu.memory_space<vmem>>, vector<1x1x128xf32>
    %173 = vector.shape_cast %172 : vector<1x1x128xf32> to vector<1x128xf32>
    %174 = vector.broadcast %173 : vector<1x128xf32> to vector<8x128xf32>
    %175 = arith.addf %164, %174 : vector<8x128xf32>
    %176 = math.exp %175 : vector<8x128xf32>
    %177 = arith.mulf %129, %176 : vector<8x128xf32>
    %178 = arith.addf %177, %171 : vector<8x128xf32>
    %179 = arith.addf %130, %164 : vector<8x128xf32>
    %cst_131 = arith.constant dense<0.000000e+00> : vector<8xf32>
    %180 = vector.multi_reduction <add>, %179, %cst_131 [1] : vector<8x128xf32> to vector<8xf32>
    %181 = vector.shape_cast %180 : vector<8xf32> to vector<8x1xf32>
    %182 = arith.subf %31, %181 : vector<8x1xf32>
    %c0_132 = arith.constant 0 : index
    %c0_133 = arith.constant 0 : index
    %183 = vector.load %arg19[%c0_132, %c0_133] : memref<128x128xf32, #tpu.memory_space<vmem>>, vector<128x128xf32>
    %cst_134 = arith.constant dense<0.000000e+00> : vector<8x128xf32>
    %184 = tpu.matmul %178, %183, %cst_134 {dimension_numbers = #tpu.dot_dimension_numbers<[1], [0], [0], [1], [0, 0, 1, 1], [], []>} : vector<8x128xf32>, vector<128x128xf32>, vector<8x128xf32> -> vector<8x128xf32>
    %c0_135 = arith.constant 0 : index
    %c0_136 = arith.constant 0 : index
    %185 = vector.load %arg20[%c0_135, %c0_136] : memref<128x128xf32, #tpu.memory_space<vmem>>, vector<128x128xf32>
    %cst_137 = arith.constant dense<0.000000e+00> : vector<8x128xf32>
    %186 = tpu.matmul %0, %185, %cst_137 {dimension_numbers = #tpu.dot_dimension_numbers<[1], [0], [0], [1], [0, 0, 1, 1], [], []>} : vector<8x128xf32>, vector<128x128xf32>, vector<8x128xf32> -> vector<8x128xf32>
    %187 = arith.addf %184, %186 : vector<8x128xf32>
    %c0_138 = arith.constant 0 : index
    %c0_139 = arith.constant 0 : index
    %188 = vector.load %arg21[%c0_138, %c0_139] : memref<8x128xf32, #tpu.memory_space<vmem>>, vector<8x128xf32>
    tpu.vector_store %arg21[%c0_138, %c0_139], %187 {strides = array<i32>} : memref<8x128xf32, #tpu.memory_space<vmem>>, vector<8x128xf32>,
    %189 = vector.shape_cast %182 : vector<8x1xf32> to vector<8x1xf32>
    %190 = vector.broadcast %189 : vector<8x1xf32> to vector<8x128xf32>
    %c0_140 = arith.constant 0 : index
    %c0_141 = arith.constant 0 : index
    %191 = vector.load %arg22[%c0_140, %c0_141] : memref<8x128xf32, #tpu.memory_space<vmem>>, vector<8x128xf32>
    tpu.vector_store %arg22[%c0_140, %c0_141], %190 {strides = array<i32>} : memref<8x128xf32, #tpu.memory_space<vmem>>, vector<8x128xf32>,
    return
  }
  func.func @transform_0(%arg0: i32) -> (i32, i32) {
    %c0_i32 = arith.constant 0 : i32
    %c0_i32_0 = arith.constant 0 : i32
    return %arg0, %c0_i32 : i32, i32
  }
  func.func @transform_1(%arg0: i32) -> (i32, i32) {
    %c0_i32 = arith.constant 0 : i32
    %c0_i32_0 = arith.constant 0 : i32
    return %arg0, %c0_i32 : i32, i32
  }
  func.func @transform_2(%arg0: i32) -> (i32, i32) {
    %c0_i32 = arith.constant 0 : i32
    %c0_i32_0 = arith.constant 0 : i32
    %c0_i32_1 = arith.constant 0 : i32
    return %c0_i32, %c0_i32_0 : i32, i32
  }
  func.func @transform_3(%arg0: i32) -> (i32, i32) {
    %c0_i32 = arith.constant 0 : i32
    %c0_i32_0 = arith.constant 0 : i32
    %c0_i32_1 = arith.constant 0 : i32
    return %c0_i32, %c0_i32_0 : i32, i32
  }
  func.func @transform_4(%arg0: i32) -> (i32, i32) {
    %c0_i32 = arith.constant 0 : i32
    %c0_i32_0 = arith.constant 0 : i32
    %c0_i32_1 = arith.constant 0 : i32
    return %c0_i32, %c0_i32_0 : i32, i32
  }
  func.func @transform_5(%arg0: i32) -> (i32, i32) {
    %c0_i32 = arith.constant 0 : i32
    %c0_i32_0 = arith.constant 0 : i32
    %c0_i32_1 = arith.constant 0 : i32
    return %c0_i32, %c0_i32_0 : i32, i32
  }
  func.func @transform_6(%arg0: i32) -> (i32, i32) {
    %c0_i32 = arith.constant 0 : i32
    %c0_i32_0 = arith.constant 0 : i32
    %c0_i32_1 = arith.constant 0 : i32
    return %c0_i32, %c0_i32_0 : i32, i32
  }
  func.func @transform_7(%arg0: i32) -> (i32, i32) {
    %c0_i32 = arith.constant 0 : i32
    %c0_i32_0 = arith.constant 0 : i32
    %c0_i32_1 = arith.constant 0 : i32
    return %c0_i32, %c0_i32_0 : i32, i32
  }
  func.func @transform_8(%arg0: i32) -> (i32, i32, i32) {
    %c0_i32 = arith.constant 0 : i32
    %c0_i32_0 = arith.constant 0 : i32
    %c0_i32_1 = arith.constant 0 : i32
    %c0_i32_2 = arith.constant 0 : i32
    return %c0_i32, %c0_i32_0, %c0_i32_1 : i32, i32, i32
  }
  func.func @transform_9(%arg0: i32) -> (i32, i32, i32) {
    %c0_i32 = arith.constant 0 : i32
    %c0_i32_0 = arith.constant 0 : i32
    %c0_i32_1 = arith.constant 0 : i32
    %c0_i32_2 = arith.constant 0 : i32
    return %c0_i32, %c0_i32_0, %c0_i32_1 : i32, i32, i32
  }
  func.func @transform_10(%arg0: i32) -> (i32, i32, i32) {
    %c0_i32 = arith.constant 0 : i32
    %c0_i32_0 = arith.constant 0 : i32
    %c0_i32_1 = arith.constant 0 : i32
    %c0_i32_2 = arith.constant 0 : i32
    return %c0_i32, %c0_i32_0, %c0_i32_1 : i32, i32, i32
  }
  func.func @transform_11(%arg0: i32) -> (i32, i32, i32) {
    %c0_i32 = arith.constant 0 : i32
    %c0_i32_0 = arith.constant 0 : i32
    %c0_i32_1 = arith.constant 0 : i32
    %c0_i32_2 = arith.constant 0 : i32
    return %c0_i32, %c0_i32_0, %c0_i32_1 : i32, i32, i32
  }
  func.func @transform_12(%arg0: i32) -> (i32, i32, i32) {
    %c0_i32 = arith.constant 0 : i32
    %c0_i32_0 = arith.constant 0 : i32
    %c0_i32_1 = arith.constant 0 : i32
    %c0_i32_2 = arith.constant 0 : i32
    return %c0_i32, %c0_i32_0, %c0_i32_1 : i32, i32, i32
  }
  func.func @transform_13(%arg0: i32) -> (i32, i32, i32) {
    %c0_i32 = arith.constant 0 : i32
    %c0_i32_0 = arith.constant 0 : i32
    %c0_i32_1 = arith.constant 0 : i32
    %c0_i32_2 = arith.constant 0 : i32
    return %c0_i32, %c0_i32_0, %c0_i32_1 : i32, i32, i32
  }
  func.func @transform_14(%arg0: i32) -> (i32, i32, i32) {
    %c0_i32 = arith.constant 0 : i32
    %c0_i32_0 = arith.constant 0 : i32
    %c0_i32_1 = arith.constant 0 : i32
    %c0_i32_2 = arith.constant 0 : i32
    return %c0_i32, %c0_i32_0, %c0_i32_1 : i32, i32, i32
  }
  func.func @transform_15(%arg0: i32) -> (i32, i32, i32) {
    %c0_i32 = arith.constant 0 : i32
    %c0_i32_0 = arith.constant 0 : i32
    %c0_i32_1 = arith.constant 0 : i32
    %c0_i32_2 = arith.constant 0 : i32
    return %c0_i32, %c0_i32_0, %c0_i32_1 : i32, i32, i32
  }
  func.func @transform_16(%arg0: i32) -> (i32, i32, i32) {
    %c0_i32 = arith.constant 0 : i32
    %c0_i32_0 = arith.constant 0 : i32
    %c0_i32_1 = arith.constant 0 : i32
    %c0_i32_2 = arith.constant 0 : i32
    return %c0_i32, %c0_i32_0, %c0_i32_1 : i32, i32, i32
  }
  func.func @transform_17(%arg0: i32) -> (i32, i32, i32) {
    %c0_i32 = arith.constant 0 : i32
    %c0_i32_0 = arith.constant 0 : i32
    %c0_i32_1 = arith.constant 0 : i32
    %c0_i32_2 = arith.constant 0 : i32
    return %c0_i32, %c0_i32_0, %c0_i32_1 : i32, i32, i32
  }
  func.func @transform_18(%arg0: i32) -> (i32, i32) {
    %c0_i32 = arith.constant 0 : i32
    %c0_i32_0 = arith.constant 0 : i32
    %c0_i32_1 = arith.constant 0 : i32
    return %c0_i32, %c0_i32_0 : i32, i32
  }
  func.func @transform_19(%arg0: i32) -> (i32, i32) {
    %c0_i32 = arith.constant 0 : i32
    %c0_i32_0 = arith.constant 0 : i32
    %c0_i32_1 = arith.constant 0 : i32
    return %c0_i32, %c0_i32_0 : i32, i32
  }
  func.func @transform_20(%arg0: i32) -> (i32, i32) {
    %c0_i32 = arith.constant 0 : i32
    %c0_i32_0 = arith.constant 0 : i32
    return %arg0, %c0_i32 : i32, i32
  }
  func.func @transform_21(%arg0: i32) -> (i32, i32) {
    %c0_i32 = arith.constant 0 : i32
    %c0_i32_0 = arith.constant 0 : i32
    return %arg0, %c0_i32 : i32, i32
  }
}

</mosaic_0001>

<llo_original>
// kernel: _forward_impl.1
$region0: #{_forward_impl.1}
  #allocation0 [shape = 'u32[]', space=smem, size = 0x4, offset = 0x4, fixed_abs, tag = 'smem constant byte address 0x4 - core index']
  #allocation1 [shape = 'u32[144,128]{1,0:T(1,128)}', space=vmem, size = 0x12000, scoped, tag = 'internal scratch']
  %s0 = inlined_call_operand.vmem [shape: f32[8,128], index: 0, kind: input, shape index: {}]
  %s1 = inlined_call_operand.vmem [shape: f32[8,128], index: 1, kind: input, shape index: {}]
  %s2 = inlined_call_operand.hbm [shape: bf16[128,128], index: 2, kind: input, shape index: {}]
  %s3 = inlined_call_operand.vmem [shape: f32[1,128], index: 3, kind: input, shape index: {}]
  %s4 = inlined_call_operand.hbm [shape: bf16[128,128], index: 4, kind: input, shape index: {}]
  %s5 = inlined_call_operand.vmem [shape: f32[1,128], index: 5, kind: input, shape index: {}]
  %s6 = inlined_call_operand.hbm [shape: bf16[128,128], index: 6, kind: input, shape index: {}]
  %s7 = inlined_call_operand.vmem [shape: f32[1,128], index: 7, kind: input, shape index: {}]
  %s8 = inlined_call_operand.hbm [shape: bf16[3,128,128], index: 8, kind: input, shape index: {}]
  %s9 = inlined_call_operand.hbm [shape: bf16[3,128,128], index: 9, kind: input, shape index: {}]
  %s10 = inlined_call_operand.vmem [shape: f32[3,1,128], index: 10, kind: input, shape index: {}]
  %s11 = inlined_call_operand.hbm [shape: bf16[3,128,128], index: 11, kind: input, shape index: {}]
  %s12 = inlined_call_operand.vmem [shape: f32[3,1,128], index: 12, kind: input, shape index: {}]
  %s13 = inlined_call_operand.hbm [shape: bf16[3,128,128], index: 13, kind: input, shape index: {}]
  %s14 = inlined_call_operand.vmem [shape: f32[3,1,128], index: 14, kind: input, shape index: {}]
  %s15 = inlined_call_operand.hbm [shape: bf16[3,128,128], index: 15, kind: input, shape index: {}]
  %s16 = inlined_call_operand.vmem [shape: f32[3,1,128], index: 16, kind: input, shape index: {}]
  %s17 = inlined_call_operand.vmem [shape: f32[3,1,128], index: 17, kind: input, shape index: {}]
  %s18 = inlined_call_operand.vmem [shape: f32[128,128], index: 18, kind: input, shape index: {}]
  %s19 = inlined_call_operand.hbm [shape: f32[128,128], index: 19, kind: input, shape index: {}]
  %s20 = inlined_call_operand.vmem [shape: f32[8,128], index: 20, kind: output, shape index: {0}]
  %s21 = inlined_call_operand.vmem [shape: f32[8,128], index: 21, kind: output, shape index: {1}]
  %22 = xla_tuple %s20, %s21
  %s23 = sld [smem:[#allocation0]]
  $region134: #{_forward_impl.1} parent=0
    _
  %s25 = ssub.s32 1, %s23
  %s26 = scalar_select 0, %s25, %s23
  $region1: #{_forward_impl.1} parent=0
    #allocation2 [shape = 'u8[32768]{0}', space=vmem, size = 0x8000, scoped, tag = 'input window, operand 2, single buffered']
    #allocation3 [shape = 's32[1]{0}', space=sflag, size = 0x4, scoped, tag = 'scoped memory for _forward_impl.1']
    #allocation4 [shape = 'u8[32768]{0}', space=vmem, size = 0x8000, scoped, tag = 'input window, operand 4, single buffered']
    #allocation5 [shape = 's32[1]{0}', space=sflag, size = 0x4, scoped, tag = 'scoped memory for _forward_impl.1']
    #allocation6 [shape = 'u8[32768]{0}', space=vmem, size = 0x8000, scoped, tag = 'input window, operand 6, single buffered']
    #allocation7 [shape = 'u8[98304]{0}', space=vmem, size = 0x18000, scoped, tag = 'input window, operand 8, single buffered']
    #allocation8 [shape = 's32[1]{0}', space=sflag, size = 0x4, scoped, tag = 'scoped memory for _forward_impl.1']
    #allocation9 [shape = 'u8[98304]{0}', space=vmem, size = 0x18000, scoped, tag = 'input window, operand 9, single buffered']
    #allocation10 [shape = 'u8[98304]{0}', space=vmem, size = 0x18000, scoped, tag = 'input window, operand 11, single buffered']
    #allocation11 [shape = 's32[1]{0}', space=sflag, size = 0x4, scoped, tag = 'scoped memory for _forward_impl.1']
    #allocation12 [shape = 'u8[98304]{0}', space=vmem, size = 0x18000, scoped, tag = 'input window, operand 13, single buffered']
    #allocation13 [shape = 'u8[98304]{0}', space=vmem, size = 0x18000, scoped, tag = 'input window, operand 15, single buffered']
    #allocation14 [shape = 's32[1]{0}', space=sflag, size = 0x4, scoped, tag = 'scoped memory for _forward_impl.1']
    #allocation15 [shape = 'u8[65536]{0}', space=vmem, size = 0x10000, scoped, tag = 'input window, operand 19, single buffered']
    %27 = vsyncpa [#allocation3], 0
    %28 = vsyncpa [#allocation5], 0
    %29 = vsyncpa [#allocation8], 0
    %30 = vsyncpa [#allocation11], 0
    %31 = vsyncpa [#allocation14], 0
    // Predicated region
    $region2: #{_forward_impl.1} parent=1 // pred_check
      _
    $region3: #{_forward_impl.1} parent=1 // pred_check_branch
      %33 = sbr.rel (0) target = $region5
    $region4: #{_forward_impl.1} parent=1 // pred_region
      _
    $region5: #{_forward_impl.1} parent=1 // pred_fallthru
      _
    // Predicated region
    $region6: #{_forward_impl.1} parent=1 // pred_check
      _
    $region7: #{_forward_impl.1} parent=1 // pred_check_branch
      %35 = sbr.rel (0) target = $region9
    $region8: #{_forward_impl.1} parent=1 // pred_region
      _
    $region9: #{_forward_impl.1} parent=1 // pred_fallthru
      _
    // Predicated region
    $region10: #{_forward_impl.1} parent=1 // pred_check
      _
    $region11: #{_forward_impl.1} parent=1 // pred_check_branch
      %37 = sbr.rel (0) target = $region13
    $region12: #{_forward_impl.1} parent=1 // pred_region
      %s39 = ssub.s32 1024, 1024
      %40 = vsyncadd [#allocation3], %s39
      %s41 = sshll.u32 [#allocation2], 4
      %s42 = int_to_ptr.vmem [resolvable:$true] %s41
      %47 = dma.hbm_to_vmem [thread:$0]  %s2, 1024, %s42, [#allocation3], 64, 64, 4
    $region13: #{_forward_impl.1} parent=1 // pred_fallthru
      _
    // Predicated region
    $region14: #{_forward_impl.1} parent=1 // pred_check
      _
    $region15: #{_forward_impl.1} parent=1 // pred_check_branch
      %49 = sbr.rel (0) target = $region17
    $region16: #{_forward_impl.1} parent=1 // pred_region
      _
    $region17: #{_forward_impl.1} parent=1 // pred_fallthru
      _
    // Predicated region
    $region18: #{_forward_impl.1} parent=1 // pred_check
      _
    $region19: #{_forward_impl.1} parent=1 // pred_check_branch
      %51 = sbr.rel (0) target = $region21
    $region20: #{_forward_impl.1} parent=1 // pred_region
      %s53 = ssub.s32 1024, 1024
      %54 = vsyncadd [#allocation5], %s53
      %s55 = sshll.u32 [#allocation4], 4
      %s56 = int_to_ptr.vmem [resolvable:$true] %s55
      %61 = dma.hbm_to_vmem [thread:$0]  %s4, 1024, %s56, [#allocation5], 64, 64, 4
    $region21: #{_forward_impl.1} parent=1 // pred_fallthru
      _
    // Predicated region
    $region22: #{_forward_impl.1} parent=1 // pred_check
      _
    $region23: #{_forward_impl.1} parent=1 // pred_check_branch
      %63 = sbr.rel (0) target = $region25
    $region24: #{_forward_impl.1} parent=1 // pred_region
      _
    $region25: #{_forward_impl.1} parent=1 // pred_fallthru
      _
    // Predicated region
    $region26: #{_forward_impl.1} parent=1 // pred_check
      _
    $region27: #{_forward_impl.1} parent=1 // pred_check_branch
      %65 = sbr.rel (0) target = $region29
    $region28: #{_forward_impl.1} parent=1 // pred_region
      %s67 = ssub.s32 1024, 1024
      %68 = vsyncadd [#allocation5], %s67
      %s69 = sshll.u32 [#allocation6], 4
      %s70 = int_to_ptr.vmem [resolvable:$true] %s69
      %75 = dma.hbm_to_vmem [thread:$0]  %s6, 1024, %s70, [#allocation5], 64, 64, 4
    $region29: #{_forward_impl.1} parent=1 // pred_fallthru
      _
    // Predicated region
    $region30: #{_forward_impl.1} parent=1 // pred_check
      _
    $region31: #{_forward_impl.1} parent=1 // pred_check_branch
      %77 = sbr.rel (0) target = $region33
    $region32: #{_forward_impl.1} parent=1 // pred_region
      _
    $region33: #{_forward_impl.1} parent=1 // pred_fallthru
      _
    // Predicated region
    $region34: #{_forward_impl.1} parent=1 // pred_check
      _
    $region35: #{_forward_impl.1} parent=1 // pred_check_branch
      %79 = sbr.rel (0) target = $region37
    $region36: #{_forward_impl.1} parent=1 // pred_region
      %s81 = ssub.s32 3072, 3072
      %82 = vsyncadd [#allocation8], %s81
      %s83 = sshll.u32 [#allocation7], 4
      %s84 = int_to_ptr.vmem [resolvable:$true] %s83
      %89 = dma.hbm_to_vmem [thread:$0]  %s8, 3072, %s84, [#allocation8], 64, 64, 4
    $region37: #{_forward_impl.1} parent=1 // pred_fallthru
      _
    // Predicated region
    $region38: #{_forward_impl.1} parent=1 // pred_check
      _
    $region39: #{_forward_impl.1} parent=1 // pred_check_branch
      %91 = sbr.rel (0) target = $region41
    $region40: #{_forward_impl.1} parent=1 // pred_region
      %s93 = ssub.s32 3072, 3072
      %94 = vsyncadd [#allocation8], %s93
      %s95 = sshll.u32 [#allocation9], 4
      %s96 = int_to_ptr.vmem [resolvable:$true] %s95
      %101 = dma.hbm_to_vmem [thread:$0]  %s9, 3072, %s96, [#allocation8], 64, 64, 4
    $region41: #{_forward_impl.1} parent=1 // pred_fallthru
      _
    // Predicated region
    $region42: #{_forward_impl.1} parent=1 // pred_check
      _
    $region43: #{_forward_impl.1} parent=1 // pred_check_branch
      %103 = sbr.rel (0) target = $region45
    $region44: #{_forward_impl.1} parent=1 // pred_region
      _
    $region45: #{_forward_impl.1} parent=1 // pred_fallthru
      _
    // Predicated region
    $region46: #{_forward_impl.1} parent=1 // pred_check
      _
    $region47: #{_forward_impl.1} parent=1 // pred_check_branch
      %105 = sbr.rel (0) target = $region49
    $region48: #{_forward_impl.1} parent=1 // pred_region
      %s107 = ssub.s32 3072, 3072
      %108 = vsyncadd [#allocation11], %s107
      %s109 = sshll.u32 [#allocation10], 4
      %s110 = int_to_ptr.vmem [resolvable:$true] %s109
      %115 = dma.hbm_to_vmem [thread:$0]  %s11, 3072, %s110, [#allocation11], 64, 64, 4
    $region49: #{_forward_impl.1} parent=1 // pred_fallthru
      _
    // Predicated region
    $region50: #{_forward_impl.1} parent=1 // pred_check
      _
    $region51: #{_forward_impl.1} parent=1 // pred_check_branch
      %117 = sbr.rel (0) target = $region53
    $region52: #{_forward_impl.1} parent=1 // pred_region
      _
    $region53: #{_forward_impl.1} parent=1 // pred_fallthru
      _
    // Predicated region
    $region54: #{_forward_impl.1} parent=1 // pred_check
      _
    $region55: #{_forward_impl.1} parent=1 // pred_check_branch
      %119 = sbr.rel (0) target = $region57
    $region56: #{_forward_impl.1} parent=1 // pred_region
      %s121 = ssub.s32 3072, 3072
      %122 = vsyncadd [#allocation11], %s121
      %s123 = sshll.u32 [#allocation12], 4
      %s124 = int_to_ptr.vmem [resolvable:$true] %s123
      %129 = dma.hbm_to_vmem [thread:$0]  %s13, 3072, %s124, [#allocation11], 64, 64, 4
    $region57: #{_forward_impl.1} parent=1 // pred_fallthru
      _
    // Predicated region
    $region58: #{_forward_impl.1} parent=1 // pred_check
      _
    $region59: #{_forward_impl.1} parent=1 // pred_check_branch
      %131 = sbr.rel (0) target = $region61
    $region60: #{_forward_impl.1} parent=1 // pred_region
      _
    $region61: #{_forward_impl.1} parent=1 // pred_fallthru
      _
    // Predicated region
    $region62: #{_forward_impl.1} parent=1 // pred_check
      _
    $region63: #{_forward_impl.1} parent=1 // pred_check_branch
      %133 = sbr.rel (0) target = $region65
    $region64: #{_forward_impl.1} parent=1 // pred_region
      %s135 = ssub.s32 3072, 3072
      %136 = vsyncadd [#allocation14], %s135
      %s137 = sshll.u32 [#allocation13], 4
      %s138 = int_to_ptr.vmem [resolvable:$true] %s137
      %143 = dma.hbm_to_vmem [thread:$0]  %s15, 3072, %s138, [#allocation14], 64, 64, 4
    $region65: #{_forward_impl.1} parent=1 // pred_fallthru
      _
    // Predicated region
    $region66: #{_forward_impl.1} parent=1 // pred_check
      _
    $region67: #{_forward_impl.1} parent=1 // pred_check_branch
      %145 = sbr.rel (0) target = $region69
    $region68: #{_forward_impl.1} parent=1 // pred_region
      _
    $region69: #{_forward_impl.1} parent=1 // pred_fallthru
      _
    // Predicated region
    $region70: #{_forward_impl.1} parent=1 // pred_check
      _
    $region71: #{_forward_impl.1} parent=1 // pred_check_branch
      %147 = sbr.rel (0) target = $region73
    $region72: #{_forward_impl.1} parent=1 // pred_region
      _
    $region73: #{_forward_impl.1} parent=1 // pred_fallthru
      _
    // Predicated region
    $region74: #{_forward_impl.1} parent=1 // pred_check
      _
    $region75: #{_forward_impl.1} parent=1 // pred_check_branch
      %149 = sbr.rel (0) target = $region77
    $region76: #{_forward_impl.1} parent=1 // pred_region
      _
    $region77: #{_forward_impl.1} parent=1 // pred_fallthru
      _
    // Predicated region
    $region78: #{_forward_impl.1} parent=1 // pred_check
      _
    $region79: #{_forward_impl.1} parent=1 // pred_check_branch
      %151 = sbr.rel (0) target = $region81
    $region80: #{_forward_impl.1} parent=1 // pred_region
      %s153 = ssub.s32 2048, 2048
      %154 = vsyncadd [#allocation14], %s153
      %s155 = sshll.u32 [#allocation15], 4
      %s156 = int_to_ptr.vmem [resolvable:$true] %s155
      %161 = dma.hbm_to_vmem [thread:$0]  %s19, 2048, %s156, [#allocation14], 128, 128, 8
    $region81: #{_forward_impl.1} parent=1 // pred_fallthru
      _
    // Predicated region
    $region82: #{_forward_impl.1} parent=1 // pred_check
      _
    $region83: #{_forward_impl.1} parent=1 // pred_check_branch
      %163 = sbr.rel (0) target = $region85
    $region84: #{_forward_impl.1} parent=1 // pred_region
      %164 = dma.done [#allocation3], 1024
    $region85: #{_forward_impl.1} parent=1 // pred_fallthru
      _
    // Predicated region
    $region86: #{_forward_impl.1} parent=1 // pred_check
      _
    $region87: #{_forward_impl.1} parent=1 // pred_check_branch
      %166 = sbr.rel (0) target = $region89
    $region88: #{_forward_impl.1} parent=1 // pred_region
      %167 = dma.done [#allocation5], 1024
    $region89: #{_forward_impl.1} parent=1 // pred_fallthru
      _
    // Predicated region
    $region90: #{_forward_impl.1} parent=1 // pred_check
      _
    $region91: #{_forward_impl.1} parent=1 // pred_check_branch
      %169 = sbr.rel (0) target = $region93
    $region92: #{_forward_impl.1} parent=1 // pred_region
      %170 = dma.done [#allocation5], 1024
    $region93: #{_forward_impl.1} parent=1 // pred_fallthru
      _
    // Predicated region
    $region94: #{_forward_impl.1} parent=1 // pred_check
      _
    $region95: #{_forward_impl.1} parent=1 // pred_check_branch
      %172 = sbr.rel (0) target = $region97
    $region96: #{_forward_impl.1} parent=1 // pred_region
      %173 = dma.done [#allocation8], 3072
    $region97: #{_forward_impl.1} parent=1 // pred_fallthru
      _
    // Predicated region
    $region98: #{_forward_impl.1} parent=1 // pred_check
      _
    $region99: #{_forward_impl.1} parent=1 // pred_check_branch
      %175 = sbr.rel (0) target = $region101
    $region100: #{_forward_impl.1} parent=1 // pred_region
      %176 = dma.done [#allocation8], 3072
    $region101: #{_forward_impl.1} parent=1 // pred_fallthru
      _
    // Predicated region
    $region102: #{_forward_impl.1} parent=1 // pred_check
      _
    $region103: #{_forward_impl.1} parent=1 // pred_check_branch
      %178 = sbr.rel (0) target = $region105
    $region104: #{_forward_impl.1} parent=1 // pred_region
      %179 = dma.done [#allocation11], 3072
    $region105: #{_forward_impl.1} parent=1 // pred_fallthru
      _
    // Predicated region
    $region106: #{_forward_impl.1} parent=1 // pred_check
      _
    $region107: #{_forward_impl.1} parent=1 // pred_check_branch
      %181 = sbr.rel (0) target = $region109
    $region108: #{_forward_impl.1} parent=1 // pred_region
      %182 = dma.done [#allocation11], 3072
    $region109: #{_forward_impl.1} parent=1 // pred_fallthru
      _
    // Predicated region
    $region110: #{_forward_impl.1} parent=1 // pred_check
      _
    $region111: #{_forward_impl.1} parent=1 // pred_check_branch
      %184 = sbr.rel (0) target = $region113
    $region112: #{_forward_impl.1} parent=1 // pred_region
      %185 = dma.done [#allocation14], 3072
    $region113: #{_forward_impl.1} parent=1 // pred_fallthru
      _
    // Predicated region
    $region114: #{_forward_impl.1} parent=1 // pred_check
      _
    $region115: #{_forward_impl.1} parent=1 // pred_check_branch
      %187 = sbr.rel (0) target = $region117
    $region116: #{_forward_impl.1} parent=1 // pred_region
      %188 = dma.done [#allocation14], 2048
    $region117: #{_forward_impl.1} parent=1 // pred_fallthru
      _
    %v190 = vld [vmem:[%s0] sm:$0xff]
    %v191 = vpack.c.bf16 %v190, %v190
    %v192 = vld [vmem:[%s1] sm:$0xff]
    %v193 = vld [vmem:[#allocation2] sm:$0xf]
    %v194 = vld [vmem:[#allocation2 + $0x4] sm:$0xf]
    %v195 = vld [vmem:[#allocation2 + $0x8] sm:$0xf]
    %v196 = vld [vmem:[#allocation2 + $0xc] sm:$0xf]
    %v197 = vld [vmem:[#allocation2 + $0x10] sm:$0xf]
    %v198 = vld [vmem:[#allocation2 + $0x14] sm:$0xf]
    %v199 = vld [vmem:[#allocation2 + $0x18] sm:$0xf]
    %v200 = vld [vmem:[#allocation2 + $0x1c] sm:$0xf]
    %v201 = vld [vmem:[#allocation2 + $0x20] sm:$0xf]
    %v202 = vld [vmem:[#allocation2 + $0x24] sm:$0xf]
    %v203 = vld [vmem:[#allocation2 + $0x28] sm:$0xf]
    %v204 = vld [vmem:[#allocation2 + $0x2c] sm:$0xf]
    %v205 = vld [vmem:[#allocation2 + $0x30] sm:$0xf]
    %v206 = vld [vmem:[#allocation2 + $0x34] sm:$0xf]
    %v207 = vld [vmem:[#allocation2 + $0x38] sm:$0xf]
    %v208 = vld [vmem:[#allocation2 + $0x3c] sm:$0xf]
    %v209 = vld [vmem:[%s3] sm:$0x1]
    %v211 = vlaneseq
    %v212 = vshrl.u32 %v211, 7
    %v213 = vsub.s32 0, %v212
    %v214 = vrot.slane %v209, %v213
    %v232 = vunpack.c.l.b16 %v193
    %v233 = vunpack.c.l.b16 %v194
    %v234 = vunpack.c.l.b16 %v195
    %v235 = vunpack.c.l.b16 %v196
    %v236 = vunpack.c.l.b16 %v197
    %v237 = vunpack.c.l.b16 %v198
    %v238 = vunpack.c.l.b16 %v199
    %v239 = vunpack.c.l.b16 %v200
    %v240 = vunpack.c.l.b16 %v201
    %v241 = vunpack.c.l.b16 %v202
    %v242 = vunpack.c.l.b16 %v203
    %v243 = vunpack.c.l.b16 %v204
    %v244 = vunpack.c.l.b16 %v205
    %v245 = vunpack.c.l.b16 %v206
    %v246 = vunpack.c.l.b16 %v207
    %v247 = vunpack.c.l.b16 %v208
    %v248 = vpack.c.b16 %v233, %v232
    %v249 = vpack.c.b16 %v235, %v234
    %v250 = vpack.c.b16 %v237, %v236
    %v251 = vpack.c.b16 %v239, %v238
    %v252 = vpack.c.b16 %v241, %v240
    %v253 = vpack.c.b16 %v243, %v242
    %v254 = vpack.c.b16 %v245, %v244
    %v255 = vpack.c.b16 %v247, %v246
    %264 = vmatprep.subr.bf16.mxu0 0
    %265 = vmatpush1.bf16.msra.mxu0 %v248
    %266 = vmatprep.subr.bf16.mxu0 0
    %267 = vmatpush1.bf16.msra.mxu0 %v249
    %268 = vmatprep.subr.bf16.mxu0 0
    %269 = vmatpush1.bf16.msra.mxu0 %v250
    %270 = vmatprep.subr.bf16.mxu0 0
    %271 = vmatpush1.bf16.msra.mxu0 %v251
    %272 = vmatprep.subr.bf16.mxu0 0
    %273 = vmatpush1.bf16.msra.mxu0 %v252
    %274 = vmatprep.subr.bf16.mxu0 0
    %275 = vmatpush1.bf16.msra.mxu0 %v253
    %276 = vmatprep.subr.bf16.mxu0 0
    %277 = vmatpush1.bf16.msra.mxu0 %v254
    %278 = vmatprep.subr.bf16.mxu0 0
    %279 = vmatpush1.bf16.msra.mxu0 %v255
    %280 = vmatprep.subr.bf16.mxu0 0
    %281 = vmatpush1.bf16.msra.mxu0 0
    %282 = vmatprep.subr.bf16.mxu0 0
    %283 = vmatpush1.bf16.msra.mxu0 0
    %284 = vmatprep.subr.bf16.mxu0 0
    %285 = vmatpush1.bf16.msra.mxu0 0
    %286 = vmatprep.subr.bf16.mxu0 0
    %287 = vmatpush1.bf16.msra.mxu0 0
    %288 = vmatprep.subr.bf16.mxu0 0
    %289 = vmatpush1.bf16.msra.mxu0 0
    %290 = vmatprep.subr.bf16.mxu0 0
    %291 = vmatpush1.bf16.msra.mxu0 0
    %292 = vmatprep.subr.bf16.mxu0 0
    %293 = vmatpush1.bf16.msra.mxu0 0
    %294 = vmatprep.subr.bf16.mxu0 0
    %295 = vmatpush1.bf16.msra.mxu0 0
    %296 = vmatprep.mubr.bf16.mxu0 0
    %297 = vmatmul.mubr.bf16.gmra.mrb[0].mxu0 %v191
    %v298 = vpop.f32.mrb[0].mxu0
    %v299 = vadd.f32 %v214, %v298
    %v300 = vpop.f32.mrb[0].mxu0
    %v301 = vpop.f32.mrb[0].mxu0
    %v302 = vpop.f32.mrb[0].mxu0
    %303 = vdwg.mxu0
    %v304 = vmax.f32 %v299, 0.0
    %v305 = vpack.c.bf16 %v304, %v304
    %v306 = vld [vmem:[#allocation4] sm:$0xf]
    %v307 = vld [vmem:[#allocation4 + $0x4] sm:$0xf]
    %v308 = vld [vmem:[#allocation4 + $0x8] sm:$0xf]
    %v309 = vld [vmem:[#allocation4 + $0xc] sm:$0xf]
    %v310 = vld [vmem:[#allocation4 + $0x10] sm:$0xf]
    %v311 = vld [vmem:[#allocation4 + $0x14] sm:$0xf]
    %v312 = vld [vmem:[#allocation4 + $0x18] sm:$0xf]
    %v313 = vld [vmem:[#allocation4 + $0x1c] sm:$0xf]
    %v314 = vld [vmem:[#allocation4 + $0x20] sm:$0xf]
    %v315 = vld [vmem:[#allocation4 + $0x24] sm:$0xf]
    %v316 = vld [vmem:[#allocation4 + $0x28] sm:$0xf]
    %v317 = vld [vmem:[#allocation4 + $0x2c] sm:$0xf]
    %v318 = vld [vmem:[#allocation4 + $0x30] sm:$0xf]
    %v319 = vld [vmem:[#allocation4 + $0x34] sm:$0xf]
    %v320 = vld [vmem:[#allocation4 + $0x38] sm:$0xf]
    %v321 = vld [vmem:[#allocation4 + $0x3c] sm:$0xf]
    %v322 = vld [vmem:[%s5] sm:$0x1]
    %v324 = vlaneseq
    %v325 = vshrl.u32 %v324, 7
    %v326 = vsub.s32 0, %v325
    %v327 = vrot.slane %v322, %v326
    %v345 = vunpack.c.l.b16 %v306
    %v346 = vunpack.c.l.b16 %v307
    %v347 = vunpack.c.l.b16 %v308
    %v348 = vunpack.c.l.b16 %v309
    %v349 = vunpack.c.l.b16 %v310
    %v350 = vunpack.c.l.b16 %v311
    %v351 = vunpack.c.l.b16 %v312
    %v352 = vunpack.c.l.b16 %v313
    %v353 = vunpack.c.l.b16 %v314
    %v354 = vunpack.c.l.b16 %v315
    %v355 = vunpack.c.l.b16 %v316
    %v356 = vunpack.c.l.b16 %v317
    %v357 = vunpack.c.l.b16 %v318
    %v358 = vunpack.c.l.b16 %v319
    %v359 = vunpack.c.l.b16 %v320
    %v360 = vunpack.c.l.b16 %v321
    %v361 = vpack.c.b16 %v346, %v345
    %v362 = vpack.c.b16 %v348, %v347
    %v363 = vpack.c.b16 %v350, %v349
    %v364 = vpack.c.b16 %v352, %v351
    %v365 = vpack.c.b16 %v354, %v353
    %v366 = vpack.c.b16 %v356, %v355
    %v367 = vpack.c.b16 %v358, %v357
    %v368 = vpack.c.b16 %v360, %v359
    %377 = vmatprep.subr.bf16.mxu0 0
    %378 = vmatpush1.bf16.msra.mxu0 %v361
    %379 = vmatprep.subr.bf16.mxu0 0
    %380 = vmatpush1.bf16.msra.mxu0 %v362
    %381 = vmatprep.subr.bf16.mxu0 0
    %382 = vmatpush1.bf16.msra.mxu0 %v363
    %383 = vmatprep.subr.bf16.mxu0 0
    %384 = vmatpush1.bf16.msra.mxu0 %v364
    %385 = vmatprep.subr.bf16.mxu0 0
    %386 = vmatpush1.bf16.msra.mxu0 %v365
    %387 = vmatprep.subr.bf16.mxu0 0
    %388 = vmatpush1.bf16.msra.mxu0 %v366
    %389 = vmatprep.subr.bf16.mxu0 0
    %390 = vmatpush1.bf16.msra.mxu0 %v367
    %391 = vmatprep.subr.bf16.mxu0 0
    %392 = vmatpush1.bf16.msra.mxu0 %v368
    %393 = vmatprep.subr.bf16.mxu0 0
    %394 = vmatpush1.bf16.msra.mxu0 0
    %395 = vmatprep.subr.bf16.mxu0 0
    %396 = vmatpush1.bf16.msra.mxu0 0
    %397 = vmatprep.subr.bf16.mxu0 0
    %398 = vmatpush1.bf16.msra.mxu0 0
    %399 = vmatprep.subr.bf16.mxu0 0
    %400 = vmatpush1.bf16.msra.mxu0 0
    %401 = vmatprep.subr.bf16.mxu0 0
    %402 = vmatpush1.bf16.msra.mxu0 0
    %403 = vmatprep.subr.bf16.mxu0 0
    %404 = vmatpush1.bf16.msra.mxu0 0
    %405 = vmatprep.subr.bf16.mxu0 0
    %406 = vmatpush1.bf16.msra.mxu0 0
    %407 = vmatprep.subr.bf16.mxu0 0
    %408 = vmatpush1.bf16.msra.mxu0 0
    %409 = vmatprep.mubr.bf16.mxu0 0
    %410 = vmatmul.mubr.bf16.gmra.mrb[0].mxu0 %v305
    %v411 = vpop.f32.mrb[0].mxu0
    %v412 = vadd.f32 %v327, %v411
    %v413 = vpop.f32.mrb[0].mxu0
    %v414 = vpop.f32.mrb[0].mxu0
    %v415 = vpop.f32.mrb[0].mxu0
    %416 = vdwg.mxu0
    %v417 = vld [vmem:[#allocation6] sm:$0xf]
    %v418 = vld [vmem:[#allocation6 + $0x4] sm:$0xf]
    %v419 = vld [vmem:[#allocation6 + $0x8] sm:$0xf]
    %v420 = vld [vmem:[#allocation6 + $0xc] sm:$0xf]
    %v421 = vld [vmem:[#allocation6 + $0x10] sm:$0xf]
    %v422 = vld [vmem:[#allocation6 + $0x14] sm:$0xf]
    %v423 = vld [vmem:[#allocation6 + $0x18] sm:$0xf]
    %v424 = vld [vmem:[#allocation6 + $0x1c] sm:$0xf]
    %v425 = vld [vmem:[#allocation6 + $0x20] sm:$0xf]
    %v426 = vld [vmem:[#allocation6 + $0x24] sm:$0xf]
    %v427 = vld [vmem:[#allocation6 + $0x28] sm:$0xf]
    %v428 = vld [vmem:[#allocation6 + $0x2c] sm:$0xf]
    %v429 = vld [vmem:[#allocation6 + $0x30] sm:$0xf]
    %v430 = vld [vmem:[#allocation6 + $0x34] sm:$0xf]
    %v431 = vld [vmem:[#allocation6 + $0x38] sm:$0xf]
    %v432 = vld [vmem:[#allocation6 + $0x3c] sm:$0xf]
    %v433 = vld [vmem:[%s7] sm:$0x1]
    %v435 = vlaneseq
    %v436 = vshrl.u32 %v435, 7
    %v437 = vsub.s32 0, %v436
    %v438 = vrot.slane %v433, %v437
    %v456 = vunpack.c.l.b16 %v417
    %v457 = vunpack.c.l.b16 %v418
    %v458 = vunpack.c.l.b16 %v419
    %v459 = vunpack.c.l.b16 %v420
    %v460 = vunpack.c.l.b16 %v421
    %v461 = vunpack.c.l.b16 %v422
    %v462 = vunpack.c.l.b16 %v423
    %v463 = vunpack.c.l.b16 %v424
    %v464 = vunpack.c.l.b16 %v425
    %v465 = vunpack.c.l.b16 %v426
    %v466 = vunpack.c.l.b16 %v427
    %v467 = vunpack.c.l.b16 %v428
    %v468 = vunpack.c.l.b16 %v429
    %v469 = vunpack.c.l.b16 %v430
    %v470 = vunpack.c.l.b16 %v431
    %v471 = vunpack.c.l.b16 %v432
    %v472 = vpack.c.b16 %v457, %v456
    %v473 = vpack.c.b16 %v459, %v458
    %v474 = vpack.c.b16 %v461, %v460
    %v475 = vpack.c.b16 %v463, %v462
    %v476 = vpack.c.b16 %v465, %v464
    %v477 = vpack.c.b16 %v467, %v466
    %v478 = vpack.c.b16 %v469, %v468
    %v479 = vpack.c.b16 %v471, %v470
    %488 = vmatprep.subr.bf16.mxu0 0
    %489 = vmatpush1.bf16.msra.mxu0 %v472
    %490 = vmatprep.subr.bf16.mxu0 0
    %491 = vmatpush1.bf16.msra.mxu0 %v473
    %492 = vmatprep.subr.bf16.mxu0 0
    %493 = vmatpush1.bf16.msra.mxu0 %v474
    %494 = vmatprep.subr.bf16.mxu0 0
    %495 = vmatpush1.bf16.msra.mxu0 %v475
    %496 = vmatprep.subr.bf16.mxu0 0
    %497 = vmatpush1.bf16.msra.mxu0 %v476
    %498 = vmatprep.subr.bf16.mxu0 0
    %499 = vmatpush1.bf16.msra.mxu0 %v477
    %500 = vmatprep.subr.bf16.mxu0 0
    %501 = vmatpush1.bf16.msra.mxu0 %v478
    %502 = vmatprep.subr.bf16.mxu0 0
    %503 = vmatpush1.bf16.msra.mxu0 %v479
    %504 = vmatprep.subr.bf16.mxu0 0
    %505 = vmatpush1.bf16.msra.mxu0 0
    %506 = vmatprep.subr.bf16.mxu0 0
    %507 = vmatpush1.bf16.msra.mxu0 0
    %508 = vmatprep.subr.bf16.mxu0 0
    %509 = vmatpush1.bf16.msra.mxu0 0
    %510 = vmatprep.subr.bf16.mxu0 0
    %511 = vmatpush1.bf16.msra.mxu0 0
    %512 = vmatprep.subr.bf16.mxu0 0
    %513 = vmatpush1.bf16.msra.mxu0 0
    %514 = vmatprep.subr.bf16.mxu0 0
    %515 = vmatpush1.bf16.msra.mxu0 0
    %516 = vmatprep.subr.bf16.mxu0 0
    %517 = vmatpush1.bf16.msra.mxu0 0
    %518 = vmatprep.subr.bf16.mxu0 0
    %519 = vmatpush1.bf16.msra.mxu0 0
    %520 = vmatprep.mubr.bf16.mxu0 0
    %521 = vmatmul.mubr.bf16.gmra.mrb[0].mxu0 %v305
    %v522 = vpop.f32.mrb[0].mxu0
    %v523 = vadd.f32 %v438, %v522
    %v524 = vpop.f32.mrb[0].mxu0
    %v525 = vpop.f32.mrb[0].mxu0
    %v526 = vpop.f32.mrb[0].mxu0
    %527 = vdwg.mxu0
    %v528 = vmul.f32 %v523, 1.442695
    %v529 = vpow.pop %v528
    %v530 = vmul.f32 %v529, %v192
    %v531 = vadd.f32 %v412, %v530
    %v532 = vmul.f32 %v192, -0.5
    %v533 = vmul.f32 %v532, %v192
    %v534 = vsub.f32 %v533, %v523
    %535 = vadd.xlane.f32.xlu0 %v534
    %v536 = vpop.xlane.xlu0 %535
    %v537 = vadd.f32 %v536, -29.584099
    %v538 = vpack.c.bf16 %v531, %v531
    %v539 = vld [vmem:[#allocation7] sm:$0xf]
    %v540 = vld [vmem:[#allocation7 + $0x4] sm:$0xf]
    %v541 = vld [vmem:[#allocation7 + $0x8] sm:$0xf]
    %v542 = vld [vmem:[#allocation7 + $0xc] sm:$0xf]
    %v543 = vld [vmem:[#allocation7 + $0x10] sm:$0xf]
    %v544 = vld [vmem:[#allocation7 + $0x14] sm:$0xf]
    %v545 = vld [vmem:[#allocation7 + $0x18] sm:$0xf]
    %v546 = vld [vmem:[#allocation7 + $0x1c] sm:$0xf]
    %v547 = vld [vmem:[#allocation7 + $0x20] sm:$0xf]
    %v548 = vld [vmem:[#allocation7 + $0x24] sm:$0xf]
    %v549 = vld [vmem:[#allocation7 + $0x28] sm:$0xf]
    %v550 = vld [vmem:[#allocation7 + $0x2c] sm:$0xf]
    %v551 = vld [vmem:[#allocation7 + $0x30] sm:$0xf]
    %v552 = vld [vmem:[#allocation7 + $0x34] sm:$0xf]
    %v553 = vld [vmem:[#allocation7 + $0x38] sm:$0xf]
    %v554 = vld [vmem:[#allocation7 + $0x3c] sm:$0xf]
    %v555 = vld [vmem:[#allocation9] sm:$0xf]
    %v556 = vld [vmem:[#allocation9 + $0x4] sm:$0xf]
    %v557 = vld [vmem:[#allocation9 + $0x8] sm:$0xf]
    %v558 = vld [vmem:[#allocation9 + $0xc] sm:$0xf]
    %v559 = vld [vmem:[#allocation9 + $0x10] sm:$0xf]
    %v560 = vld [vmem:[#allocation9 + $0x14] sm:$0xf]
    %v561 = vld [vmem:[#allocation9 + $0x18] sm:$0xf]
    %v562 = vld [vmem:[#allocation9 + $0x1c] sm:$0xf]
    %v563 = vld [vmem:[#allocation9 + $0x20] sm:$0xf]
    %v564 = vld [vmem:[#allocation9 + $0x24] sm:$0xf]
    %v565 = vld [vmem:[#allocation9 + $0x28] sm:$0xf]
    %v566 = vld [vmem:[#allocation9 + $0x2c] sm:$0xf]
    %v567 = vld [vmem:[#allocation9 + $0x30] sm:$0xf]
    %v568 = vld [vmem:[#allocation9 + $0x34] sm:$0xf]
    %v569 = vld [vmem:[#allocation9 + $0x38] sm:$0xf]
    %v570 = vld [vmem:[#allocation9 + $0x3c] sm:$0xf]
    %v587 = vunpack.c.l.b16 %v555
    %v588 = vunpack.c.l.b16 %v556
    %v589 = vunpack.c.l.b16 %v557
    %v590 = vunpack.c.l.b16 %v558
    %v591 = vunpack.c.l.b16 %v559
    %v592 = vunpack.c.l.b16 %v560
    %v593 = vunpack.c.l.b16 %v561
    %v594 = vunpack.c.l.b16 %v562
    %v595 = vunpack.c.l.b16 %v563
    %v596 = vunpack.c.l.b16 %v564
    %v597 = vunpack.c.l.b16 %v565
    %v598 = vunpack.c.l.b16 %v566
    %v599 = vunpack.c.l.b16 %v567
    %v600 = vunpack.c.l.b16 %v568
    %v601 = vunpack.c.l.b16 %v569
    %v602 = vunpack.c.l.b16 %v570
    %v603 = vpack.c.b16 %v588, %v587
    %v604 = vpack.c.b16 %v590, %v589
    %v605 = vpack.c.b16 %v592, %v591
    %v606 = vpack.c.b16 %v594, %v593
    %v607 = vpack.c.b16 %v596, %v595
    %v608 = vpack.c.b16 %v598, %v597
    %v609 = vpack.c.b16 %v600, %v599
    %v610 = vpack.c.b16 %v602, %v601
    %619 = vmatprep.subr.bf16.mxu0 0
    %620 = vmatpush1.bf16.msra.mxu0 %v603
    %621 = vmatprep.subr.bf16.mxu0 0
    %622 = vmatpush1.bf16.msra.mxu0 %v604
    %623 = vmatprep.subr.bf16.mxu0 0
    %624 = vmatpush1.bf16.msra.mxu0 %v605
    %625 = vmatprep.subr.bf16.mxu0 0
    %626 = vmatpush1.bf16.msra.mxu0 %v606
    %627 = vmatprep.subr.bf16.mxu0 0
    %628 = vmatpush1.bf16.msra.mxu0 %v607
    %629 = vmatprep.subr.bf16.mxu0 0
    %630 = vmatpush1.bf16.msra.mxu0 %v608
    %631 = vmatprep.subr.bf16.mxu0 0
    %632 = vmatpush1.bf16.msra.mxu0 %v609
    %633 = vmatprep.subr.bf16.mxu0 0
    %634 = vmatpush1.bf16.msra.mxu0 %v610
    %635 = vmatprep.subr.bf16.mxu0 0
    %636 = vmatpush1.bf16.msra.mxu0 0
    %637 = vmatprep.subr.bf16.mxu0 0
    %638 = vmatpush1.bf16.msra.mxu0 0
    %639 = vmatprep.subr.bf16.mxu0 0
    %640 = vmatpush1.bf16.msra.mxu0 0
    %641 = vmatprep.subr.bf16.mxu0 0
    %642 = vmatpush1.bf16.msra.mxu0 0
    %643 = vmatprep.subr.bf16.mxu0 0
    %644 = vmatpush1.bf16.msra.mxu0 0
    %645 = vmatprep.subr.bf16.mxu0 0
    %646 = vmatpush1.bf16.msra.mxu0 0
    %647 = vmatprep.subr.bf16.mxu0 0
    %648 = vmatpush1.bf16.msra.mxu0 0
    %649 = vmatprep.subr.bf16.mxu0 0
    %650 = vmatpush1.bf16.msra.mxu0 0
    %651 = vmatprep.mubr.bf16.mxu0 0
    %652 = vmatmul.mubr.bf16.gmra.mrb[0].mxu0 %v191
    %v653 = vpop.f32.mrb[0].mxu0
    %v654 = vadd.f32 0.0, %v653
    %v655 = vpop.f32.mrb[0].mxu0
    %v656 = vpop.f32.mrb[0].mxu0
    %v657 = vpop.f32.mrb[0].mxu0
    %658 = vdwg.mxu0
    %v675 = vunpack.c.l.b16 %v539
    %v676 = vunpack.c.l.b16 %v540
    %v677 = vunpack.c.l.b16 %v541
    %v678 = vunpack.c.l.b16 %v542
    %v679 = vunpack.c.l.b16 %v543
    %v680 = vunpack.c.l.b16 %v544
    %v681 = vunpack.c.l.b16 %v545
    %v682 = vunpack.c.l.b16 %v546
    %v683 = vunpack.c.l.b16 %v547
    %v684 = vunpack.c.l.b16 %v548
    %v685 = vunpack.c.l.b16 %v549
    %v686 = vunpack.c.l.b16 %v550
    %v687 = vunpack.c.l.b16 %v551
    %v688 = vunpack.c.l.b16 %v552
    %v689 = vunpack.c.l.b16 %v553
    %v690 = vunpack.c.l.b16 %v554
    %v691 = vpack.c.b16 %v676, %v675
    %v692 = vpack.c.b16 %v678, %v677
    %v693 = vpack.c.b16 %v680, %v679
    %v694 = vpack.c.b16 %v682, %v681
    %v695 = vpack.c.b16 %v684, %v683
    %v696 = vpack.c.b16 %v686, %v685
    %v697 = vpack.c.b16 %v688, %v687
    %v698 = vpack.c.b16 %v690, %v689
    %707 = vmatprep.subr.bf16.mxu0 0
    %708 = vmatpush1.bf16.msra.mxu0 %v691
    %709 = vmatprep.subr.bf16.mxu0 0
    %710 = vmatpush1.bf16.msra.mxu0 %v692
    %711 = vmatprep.subr.bf16.mxu0 0
    %712 = vmatpush1.bf16.msra.mxu0 %v693
    %713 = vmatprep.subr.bf16.mxu0 0
    %714 = vmatpush1.bf16.msra.mxu0 %v694
    %715 = vmatprep.subr.bf16.mxu0 0
    %716 = vmatpush1.bf16.msra.mxu0 %v695
    %717 = vmatprep.subr.bf16.mxu0 0
    %718 = vmatpush1.bf16.msra.mxu0 %v696
    %719 = vmatprep.subr.bf16.mxu0 0
    %720 = vmatpush1.bf16.msra.mxu0 %v697
    %721 = vmatprep.subr.bf16.mxu0 0
    %722 = vmatpush1.bf16.msra.mxu0 %v698
    %723 = vmatprep.subr.bf16.mxu0 0
    %724 = vmatpush1.bf16.msra.mxu0 0
    %725 = vmatprep.subr.bf16.mxu0 0
    %726 = vmatpush1.bf16.msra.mxu0 0
    %727 = vmatprep.subr.bf16.mxu0 0
    %728 = vmatpush1.bf16.msra.mxu0 0
    %729 = vmatprep.subr.bf16.mxu0 0
    %730 = vmatpush1.bf16.msra.mxu0 0
    %731 = vmatprep.subr.bf16.mxu0 0
    %732 = vmatpush1.bf16.msra.mxu0 0
    %733 = vmatprep.subr.bf16.mxu0 0
    %734 = vmatpush1.bf16.msra.mxu0 0
    %735 = vmatprep.subr.bf16.mxu0 0
    %736 = vmatpush1.bf16.msra.mxu0 0
    %737 = vmatprep.subr.bf16.mxu0 0
    %738 = vmatpush1.bf16.msra.mxu0 0
    %739 = vmatprep.mubr.bf16.mxu0 0
    %740 = vmatmul.mubr.bf16.gmra.mrb[0].mxu0 %v538
    %v741 = vpop.f32.mrb[0].mxu0
    %v742 = vadd.f32 %v654, %v741
    %v743 = vpop.f32.mrb[0].mxu0
    %v744 = vpop.f32.mrb[0].mxu0
    %v745 = vpop.f32.mrb[0].mxu0
    %746 = vdwg.mxu0
    %v747 = vld [vmem:[%s10] sm:$0x1]
    %v749 = vlaneseq
    %v750 = vshrl.u32 %v749, 7
    %v751 = vsub.s32 0, %v750
    %v752 = vrot.slane %v747, %v751
    %v754 = vadd.f32 %v742, %v752
    %v755 = vmax.f32 %v754, 0.0
    %v756 = vpack.c.bf16 %v755, %v755
    %v757 = vld [vmem:[#allocation10] sm:$0xf]
    %v758 = vld [vmem:[#allocation10 + $0x4] sm:$0xf]
    %v759 = vld [vmem:[#allocation10 + $0x8] sm:$0xf]
    %v760 = vld [vmem:[#allocation10 + $0xc] sm:$0xf]
    %v761 = vld [vmem:[#allocation10 + $0x10] sm:$0xf]
    %v762 = vld [vmem:[#allocation10 + $0x14] sm:$0xf]
    %v763 = vld [vmem:[#allocation10 + $0x18] sm:$0xf]
    %v764 = vld [vmem:[#allocation10 + $0x1c] sm:$0xf]
    %v765 = vld [vmem:[#allocation10 + $0x20] sm:$0xf]
    %v766 = vld [vmem:[#allocation10 + $0x24] sm:$0xf]
    %v767 = vld [vmem:[#allocation10 + $0x28] sm:$0xf]
    %v768 = vld [vmem:[#allocation10 + $0x2c] sm:$0xf]
    %v769 = vld [vmem:[#allocation10 + $0x30] sm:$0xf]
    %v770 = vld [vmem:[#allocation10 + $0x34] sm:$0xf]
    %v771 = vld [vmem:[#allocation10 + $0x38] sm:$0xf]
    %v772 = vld [vmem:[#allocation10 + $0x3c] sm:$0xf]
    %v773 = vld [vmem:[%s12] sm:$0x1]
    %v775 = vlaneseq
    %v776 = vshrl.u32 %v775, 7
    %v777 = vsub.s32 0, %v776
    %v778 = vrot.slane %v773, %v777
    %v796 = vunpack.c.l.b16 %v757
    %v797 = vunpack.c.l.b16 %v758
    %v798 = vunpack.c.l.b16 %v759
    %v799 = vunpack.c.l.b16 %v760
    %v800 = vunpack.c.l.b16 %v761
    %v801 = vunpack.c.l.b16 %v762
    %v802 = vunpack.c.l.b16 %v763
    %v803 = vunpack.c.l.b16 %v764
    %v804 = vunpack.c.l.b16 %v765
    %v805 = vunpack.c.l.b16 %v766
    %v806 = vunpack.c.l.b16 %v767
    %v807 = vunpack.c.l.b16 %v768
    %v808 = vunpack.c.l.b16 %v769
    %v809 = vunpack.c.l.b16 %v770
    %v810 = vunpack.c.l.b16 %v771
    %v811 = vunpack.c.l.b16 %v772
    %v812 = vpack.c.b16 %v797, %v796
    %v813 = vpack.c.b16 %v799, %v798
    %v814 = vpack.c.b16 %v801, %v800
    %v815 = vpack.c.b16 %v803, %v802
    %v816 = vpack.c.b16 %v805, %v804
    %v817 = vpack.c.b16 %v807, %v806
    %v818 = vpack.c.b16 %v809, %v808
    %v819 = vpack.c.b16 %v811, %v810
    %828 = vmatprep.subr.bf16.mxu0 0
    %829 = vmatpush1.bf16.msra.mxu0 %v812
    %830 = vmatprep.subr.bf16.mxu0 0
    %831 = vmatpush1.bf16.msra.mxu0 %v813
    %832 = vmatprep.subr.bf16.mxu0 0
    %833 = vmatpush1.bf16.msra.mxu0 %v814
    %834 = vmatprep.subr.bf16.mxu0 0
    %835 = vmatpush1.bf16.msra.mxu0 %v815
    %836 = vmatprep.subr.bf16.mxu0 0
    %837 = vmatpush1.bf16.msra.mxu0 %v816
    %838 = vmatprep.subr.bf16.mxu0 0
    %839 = vmatpush1.bf16.msra.mxu0 %v817
    %840 = vmatprep.subr.bf16.mxu0 0
    %841 = vmatpush1.bf16.msra.mxu0 %v818
    %842 = vmatprep.subr.bf16.mxu0 0
    %843 = vmatpush1.bf16.msra.mxu0 %v819
    %844 = vmatprep.subr.bf16.mxu0 0
    %845 = vmatpush1.bf16.msra.mxu0 0
    %846 = vmatprep.subr.bf16.mxu0 0
    %847 = vmatpush1.bf16.msra.mxu0 0
    %848 = vmatprep.subr.bf16.mxu0 0
    %849 = vmatpush1.bf16.msra.mxu0 0
    %850 = vmatprep.subr.bf16.mxu0 0
    %851 = vmatpush1.bf16.msra.mxu0 0
    %852 = vmatprep.subr.bf16.mxu0 0
    %853 = vmatpush1.bf16.msra.mxu0 0
    %854 = vmatprep.subr.bf16.mxu0 0
    %855 = vmatpush1.bf16.msra.mxu0 0
    %856 = vmatprep.subr.bf16.mxu0 0
    %857 = vmatpush1.bf16.msra.mxu0 0
    %858 = vmatprep.subr.bf16.mxu0 0
    %859 = vmatpush1.bf16.msra.mxu0 0
    %860 = vmatprep.mubr.bf16.mxu0 0
    %861 = vmatmul.mubr.bf16.gmra.mrb[0].mxu0 %v756
    %v862 = vpop.f32.mrb[0].mxu0
    %v863 = vadd.f32 %v778, %v862
    %v864 = vpop.f32.mrb[0].mxu0
    %v865 = vpop.f32.mrb[0].mxu0
    %v866 = vpop.f32.mrb[0].mxu0
    %867 = vdwg.mxu0
    %v868 = vmax.f32 %v863, 0.0
    %v869 = vadd.f32 %v755, %v868
    %v870 = vpack.c.bf16 %v869, %v869
    %v871 = vld [vmem:[#allocation12] sm:$0xf]
    %v872 = vld [vmem:[#allocation12 + $0x4] sm:$0xf]
    %v873 = vld [vmem:[#allocation12 + $0x8] sm:$0xf]
    %v874 = vld [vmem:[#allocation12 + $0xc] sm:$0xf]
    %v875 = vld [vmem:[#allocation12 + $0x10] sm:$0xf]
    %v876 = vld [vmem:[#allocation12 + $0x14] sm:$0xf]
    %v877 = vld [vmem:[#allocation12 + $0x18] sm:$0xf]
    %v878 = vld [vmem:[#allocation12 + $0x1c] sm:$0xf]
    %v879 = vld [vmem:[#allocation12 + $0x20] sm:$0xf]
    %v880 = vld [vmem:[#allocation12 + $0x24] sm:$0xf]
    %v881 = vld [vmem:[#allocation12 + $0x28] sm:$0xf]
    %v882 = vld [vmem:[#allocation12 + $0x2c] sm:$0xf]
    %v883 = vld [vmem:[#allocation12 + $0x30] sm:$0xf]
    %v884 = vld [vmem:[#allocation12 + $0x34] sm:$0xf]
    %v885 = vld [vmem:[#allocation12 + $0x38] sm:$0xf]
    %v886 = vld [vmem:[#allocation12 + $0x3c] sm:$0xf]
    %v887 = vld [vmem:[%s14] sm:$0x1]
    %v889 = vlaneseq
    %v890 = vshrl.u32 %v889, 7
    %v891 = vsub.s32 0, %v890
    %v892 = vrot.slane %v887, %v891
    %v910 = vunpack.c.l.b16 %v871
    %v911 = vunpack.c.l.b16 %v872
    %v912 = vunpack.c.l.b16 %v873
    %v913 = vunpack.c.l.b16 %v874
    %v914 = vunpack.c.l.b16 %v875
    %v915 = vunpack.c.l.b16 %v876
    %v916 = vunpack.c.l.b16 %v877
    %v917 = vunpack.c.l.b16 %v878
    %v918 = vunpack.c.l.b16 %v879
    %v919 = vunpack.c.l.b16 %v880
    %v920 = vunpack.c.l.b16 %v881
    %v921 = vunpack.c.l.b16 %v882
    %v922 = vunpack.c.l.b16 %v883
    %v923 = vunpack.c.l.b16 %v884
    %v924 = vunpack.c.l.b16 %v885
    %v925 = vunpack.c.l.b16 %v886
    %v926 = vpack.c.b16 %v911, %v910
    %v927 = vpack.c.b16 %v913, %v912
    %v928 = vpack.c.b16 %v915, %v914
    %v929 = vpack.c.b16 %v917, %v916
    %v930 = vpack.c.b16 %v919, %v918
    %v931 = vpack.c.b16 %v921, %v920
    %v932 = vpack.c.b16 %v923, %v922
    %v933 = vpack.c.b16 %v925, %v924
    %942 = vmatprep.subr.bf16.mxu0 0
    %943 = vmatpush1.bf16.msra.mxu0 %v926
    %944 = vmatprep.subr.bf16.mxu0 0
    %945 = vmatpush1.bf16.msra.mxu0 %v927
    %946 = vmatprep.subr.bf16.mxu0 0
    %947 = vmatpush1.bf16.msra.mxu0 %v928
    %948 = vmatprep.subr.bf16.mxu0 0
    %949 = vmatpush1.bf16.msra.mxu0 %v929
    %950 = vmatprep.subr.bf16.mxu0 0
    %951 = vmatpush1.bf16.msra.mxu0 %v930
    %952 = vmatprep.subr.bf16.mxu0 0
    %953 = vmatpush1.bf16.msra.mxu0 %v931
    %954 = vmatprep.subr.bf16.mxu0 0
    %955 = vmatpush1.bf16.msra.mxu0 %v932
    %956 = vmatprep.subr.bf16.mxu0 0
    %957 = vmatpush1.bf16.msra.mxu0 %v933
    %958 = vmatprep.subr.bf16.mxu0 0
    %959 = vmatpush1.bf16.msra.mxu0 0
    %960 = vmatprep.subr.bf16.mxu0 0
    %961 = vmatpush1.bf16.msra.mxu0 0
    %962 = vmatprep.subr.bf16.mxu0 0
    %963 = vmatpush1.bf16.msra.mxu0 0
    %964 = vmatprep.subr.bf16.mxu0 0
    %965 = vmatpush1.bf16.msra.mxu0 0
    %966 = vmatprep.subr.bf16.mxu0 0
    %967 = vmatpush1.bf16.msra.mxu0 0
    %968 = vmatprep.subr.bf16.mxu0 0
    %969 = vmatpush1.bf16.msra.mxu0 0
    %970 = vmatprep.subr.bf16.mxu0 0
    %971 = vmatpush1.bf16.msra.mxu0 0
    %972 = vmatprep.subr.bf16.mxu0 0
    %973 = vmatpush1.bf16.msra.mxu0 0
    %974 = vmatprep.mubr.bf16.mxu0 0
    %975 = vmatmul.mubr.bf16.gmra.mrb[0].mxu0 %v870
    %v976 = vpop.f32.mrb[0].mxu0
    %v977 = vadd.f32 %v892, %v976
    %v978 = vpop.f32.mrb[0].mxu0
    %v979 = vpop.f32.mrb[0].mxu0
    %v980 = vpop.f32.mrb[0].mxu0
    %981 = vdwg.mxu0
    %v982 = vtanh.pop %v977
    %v983 = vld [vmem:[#allocation13] sm:$0xf]
    %v984 = vld [vmem:[#allocation13 + $0x4] sm:$0xf]
    %v985 = vld [vmem:[#allocation13 + $0x8] sm:$0xf]
    %v986 = vld [vmem:[#allocation13 + $0xc] sm:$0xf]
    %v987 = vld [vmem:[#allocation13 + $0x10] sm:$0xf]
    %v988 = vld [vmem:[#allocation13 + $0x14] sm:$0xf]
    %v989 = vld [vmem:[#allocation13 + $0x18] sm:$0xf]
    %v990 = vld [vmem:[#allocation13 + $0x1c] sm:$0xf]
    %v991 = vld [vmem:[#allocation13 + $0x20] sm:$0xf]
    %v992 = vld [vmem:[#allocation13 + $0x24] sm:$0xf]
    %v993 = vld [vmem:[#allocation13 + $0x28] sm:$0xf]
    %v994 = vld [vmem:[#allocation13 + $0x2c] sm:$0xf]
    %v995 = vld [vmem:[#allocation13 + $0x30] sm:$0xf]
    %v996 = vld [vmem:[#allocation13 + $0x34] sm:$0xf]
    %v997 = vld [vmem:[#allocation13 + $0x38] sm:$0xf]
    %v998 = vld [vmem:[#allocation13 + $0x3c] sm:$0xf]
    %v999 = vld [vmem:[%s16] sm:$0x1]
    %v1001 = vlaneseq
    %v1002 = vshrl.u32 %v1001, 7
    %v1003 = vsub.s32 0, %v1002
    %v1004 = vrot.slane %v999, %v1003
    %v1022 = vunpack.c.l.b16 %v983
    %v1023 = vunpack.c.l.b16 %v984
    %v1024 = vunpack.c.l.b16 %v985
    %v1025 = vunpack.c.l.b16 %v986
    %v1026 = vunpack.c.l.b16 %v987
    %v1027 = vunpack.c.l.b16 %v988
    %v1028 = vunpack.c.l.b16 %v989
    %v1029 = vunpack.c.l.b16 %v990
    %v1030 = vunpack.c.l.b16 %v991
    %v1031 = vunpack.c.l.b16 %v992
    %v1032 = vunpack.c.l.b16 %v993
    %v1033 = vunpack.c.l.b16 %v994
    %v1034 = vunpack.c.l.b16 %v995
    %v1035 = vunpack.c.l.b16 %v996
    %v1036 = vunpack.c.l.b16 %v997
    %v1037 = vunpack.c.l.b16 %v998
    %v1038 = vpack.c.b16 %v1023, %v1022
    %v1039 = vpack.c.b16 %v1025, %v1024
    %v1040 = vpack.c.b16 %v1027, %v1026
    %v1041 = vpack.c.b16 %v1029, %v1028
    %v1042 = vpack.c.b16 %v1031, %v1030
    %v1043 = vpack.c.b16 %v1033, %v1032
    %v1044 = vpack.c.b16 %v1035, %v1034
    %v1045 = vpack.c.b16 %v1037, %v1036
    %1054 = vmatprep.subr.bf16.mxu0 0
    %1055 = vmatpush1.bf16.msra.mxu0 %v1038
    %1056 = vmatprep.subr.bf16.mxu0 0
    %1057 = vmatpush1.bf16.msra.mxu0 %v1039
    %1058 = vmatprep.subr.bf16.mxu0 0
    %1059 = vmatpush1.bf16.msra.mxu0 %v1040
    %1060 = vmatprep.subr.bf16.mxu0 0
    %1061 = vmatpush1.bf16.msra.mxu0 %v1041
    %1062 = vmatprep.subr.bf16.mxu0 0
    %1063 = vmatpush1.bf16.msra.mxu0 %v1042
    %1064 = vmatprep.subr.bf16.mxu0 0
    %1065 = vmatpush1.bf16.msra.mxu0 %v1043
    %1066 = vmatprep.subr.bf16.mxu0 0
    %1067 = vmatpush1.bf16.msra.mxu0 %v1044
    %1068 = vmatprep.subr.bf16.mxu0 0
    %1069 = vmatpush1.bf16.msra.mxu0 %v1045
    %1070 = vmatprep.subr.bf16.mxu0 0
    %1071 = vmatpush1.bf16.msra.mxu0 0
    %1072 = vmatprep.subr.bf16.mxu0 0
    %1073 = vmatpush1.bf16.msra.mxu0 0
    %1074 = vmatprep.subr.bf16.mxu0 0
    %1075 = vmatpush1.bf16.msra.mxu0 0
    %1076 = vmatprep.subr.bf16.mxu0 0
    %1077 = vmatpush1.bf16.msra.mxu0 0
    %1078 = vmatprep.subr.bf16.mxu0 0
    %1079 = vmatpush1.bf16.msra.mxu0 0
    %1080 = vmatprep.subr.bf16.mxu0 0
    %1081 = vmatpush1.bf16.msra.mxu0 0
    %1082 = vmatprep.subr.bf16.mxu0 0
    %1083 = vmatpush1.bf16.msra.mxu0 0
    %1084 = vmatprep.subr.bf16.mxu0 0
    %1085 = vmatpush1.bf16.msra.mxu0 0
    %1086 = vmatprep.mubr.bf16.mxu0 0
    %1087 = vmatmul.mubr.bf16.gmra.mrb[0].mxu0 %v870
    %v1088 = vpop.f32.mrb[0].mxu0
    %v1089 = vadd.f32 %v1004, %v1088
    %v1090 = vpop.f32.mrb[0].mxu0
    %v1091 = vpop.f32.mrb[0].mxu0
    %v1092 = vpop.f32.mrb[0].mxu0
    %1093 = vdwg.mxu0
    %v1094 = vld [vmem:[%s17] sm:$0x1]
    %v1096 = vlaneseq
    %v1097 = vshrl.u32 %v1096, 7
    %v1098 = vsub.s32 0, %v1097
    %v1099 = vrot.slane %v1094, %v1098
    %v1101 = vadd.f32 %v982, %v1099
    %v1102 = vmul.f32 %v1101, 1.442695
    %v1103 = vpow.pop %v1102
    %v1104 = vmul.f32 %v531, %v1103
    %v1105 = vadd.f32 %v1104, %v1089
    %v1106 = vadd.f32 %v982, 0.0
    %v1107 = vpack.c.bf16 %v1105, %v1105
    %s1108 = scalar_lea.vmem [#allocation7], 64
    %v1109 = vld [vmem:[%s1108] sm:$0xf]
    %v1110 = vld [vmem:[%s1108 + $0x4] sm:$0xf]
    %v1111 = vld [vmem:[%s1108 + $0x8] sm:$0xf]
    %v1112 = vld [vmem:[%s1108 + $0xc] sm:$0xf]
    %v1113 = vld [vmem:[%s1108 + $0x10] sm:$0xf]
    %v1114 = vld [vmem:[%s1108 + $0x14] sm:$0xf]
    %v1115 = vld [vmem:[%s1108 + $0x18] sm:$0xf]
    %v1116 = vld [vmem:[%s1108 + $0x1c] sm:$0xf]
    %v1117 = vld [vmem:[%s1108 + $0x20] sm:$0xf]
    %v1118 = vld [vmem:[%s1108 + $0x24] sm:$0xf]
    %v1119 = vld [vmem:[%s1108 + $0x28] sm:$0xf]
    %v1120 = vld [vmem:[%s1108 + $0x2c] sm:$0xf]
    %v1121 = vld [vmem:[%s1108 + $0x30] sm:$0xf]
    %v1122 = vld [vmem:[%s1108 + $0x34] sm:$0xf]
    %v1123 = vld [vmem:[%s1108 + $0x38] sm:$0xf]
    %v1124 = vld [vmem:[%s1108 + $0x3c] sm:$0xf]
    %s1125 = scalar_lea.vmem [#allocation9], 64
    %v1126 = vld [vmem:[%s1125] sm:$0xf]
    %v1127 = vld [vmem:[%s1125 + $0x4] sm:$0xf]
    %v1128 = vld [vmem:[%s1125 + $0x8] sm:$0xf]
    %v1129 = vld [vmem:[%s1125 + $0xc] sm:$0xf]
    %v1130 = vld [vmem:[%s1125 + $0x10] sm:$0xf]
    %v1131 = vld [vmem:[%s1125 + $0x14] sm:$0xf]
    %v1132 = vld [vmem:[%s1125 + $0x18] sm:$0xf]
    %v1133 = vld [vmem:[%s1125 + $0x1c] sm:$0xf]
    %v1134 = vld [vmem:[%s1125 + $0x20] sm:$0xf]
    %v1135 = vld [vmem:[%s1125 + $0x24] sm:$0xf]
    %v1136 = vld [vmem:[%s1125 + $0x28] sm:$0xf]
    %v1137 = vld [vmem:[%s1125 + $0x2c] sm:$0xf]
    %v1138 = vld [vmem:[%s1125 + $0x30] sm:$0xf]
    %v1139 = vld [vmem:[%s1125 + $0x34] sm:$0xf]
    %v1140 = vld [vmem:[%s1125 + $0x38] sm:$0xf]
    %v1141 = vld [vmem:[%s1125 + $0x3c] sm:$0xf]
    %v1158 = vunpack.c.l.b16 %v1126
    %v1159 = vunpack.c.l.b16 %v1127
    %v1160 = vunpack.c.l.b16 %v1128
    %v1161 = vunpack.c.l.b16 %v1129
    %v1162 = vunpack.c.l.b16 %v1130
    %v1163 = vunpack.c.l.b16 %v1131
    %v1164 = vunpack.c.l.b16 %v1132
    %v1165 = vunpack.c.l.b16 %v1133
    %v1166 = vunpack.c.l.b16 %v1134
    %v1167 = vunpack.c.l.b16 %v1135
    %v1168 = vunpack.c.l.b16 %v1136
    %v1169 = vunpack.c.l.b16 %v1137
    %v1170 = vunpack.c.l.b16 %v1138
    %v1171 = vunpack.c.l.b16 %v1139
    %v1172 = vunpack.c.l.b16 %v1140
    %v1173 = vunpack.c.l.b16 %v1141
    %v1174 = vpack.c.b16 %v1159, %v1158
    %v1175 = vpack.c.b16 %v1161, %v1160
    %v1176 = vpack.c.b16 %v1163, %v1162
    %v1177 = vpack.c.b16 %v1165, %v1164
    %v1178 = vpack.c.b16 %v1167, %v1166
    %v1179 = vpack.c.b16 %v1169, %v1168
    %v1180 = vpack.c.b16 %v1171, %v1170
    %v1181 = vpack.c.b16 %v1173, %v1172
    %1190 = vmatprep.subr.bf16.mxu0 0
    %1191 = vmatpush1.bf16.msra.mxu0 %v1174
    %1192 = vmatprep.subr.bf16.mxu0 0
    %1193 = vmatpush1.bf16.msra.mxu0 %v1175
    %1194 = vmatprep.subr.bf16.mxu0 0
    %1195 = vmatpush1.bf16.msra.mxu0 %v1176
    %1196 = vmatprep.subr.bf16.mxu0 0
    %1197 = vmatpush1.bf16.msra.mxu0 %v1177
    %1198 = vmatprep.subr.bf16.mxu0 0
    %1199 = vmatpush1.bf16.msra.mxu0 %v1178
    %1200 = vmatprep.subr.bf16.mxu0 0
    %1201 = vmatpush1.bf16.msra.mxu0 %v1179
    %1202 = vmatprep.subr.bf16.mxu0 0
    %1203 = vmatpush1.bf16.msra.mxu0 %v1180
    %1204 = vmatprep.subr.bf16.mxu0 0
    %1205 = vmatpush1.bf16.msra.mxu0 %v1181
    %1206 = vmatprep.subr.bf16.mxu0 0
    %1207 = vmatpush1.bf16.msra.mxu0 0
    %1208 = vmatprep.subr.bf16.mxu0 0
    %1209 = vmatpush1.bf16.msra.mxu0 0
    %1210 = vmatprep.subr.bf16.mxu0 0
    %1211 = vmatpush1.bf16.msra.mxu0 0
    %1212 = vmatprep.subr.bf16.mxu0 0
    %1213 = vmatpush1.bf16.msra.mxu0 0
    %1214 = vmatprep.subr.bf16.mxu0 0
    %1215 = vmatpush1.bf16.msra.mxu0 0
    %1216 = vmatprep.subr.bf16.mxu0 0
    %1217 = vmatpush1.bf16.msra.mxu0 0
    %1218 = vmatprep.subr.bf16.mxu0 0
    %1219 = vmatpush1.bf16.msra.mxu0 0
    %1220 = vmatprep.subr.bf16.mxu0 0
    %1221 = vmatpush1.bf16.msra.mxu0 0
    %1222 = vmatprep.mubr.bf16.mxu0 0
    %1223 = vmatmul.mubr.bf16.gmra.mrb[0].mxu0 %v191
    %v1224 = vpop.f32.mrb[0].mxu0
    %v1225 = vadd.f32 0.0, %v1224
    %v1226 = vpop.f32.mrb[0].mxu0
    %v1227 = vpop.f32.mrb[0].mxu0
    %v1228 = vpop.f32.mrb[0].mxu0
    %1229 = vdwg.mxu0
    %v1246 = vunpack.c.l.b16 %v1109
    %v1247 = vunpack.c.l.b16 %v1110
    %v1248 = vunpack.c.l.b16 %v1111
    %v1249 = vunpack.c.l.b16 %v1112
    %v1250 = vunpack.c.l.b16 %v1113
    %v1251 = vunpack.c.l.b16 %v1114
    %v1252 = vunpack.c.l.b16 %v1115
    %v1253 = vunpack.c.l.b16 %v1116
    %v1254 = vunpack.c.l.b16 %v1117
    %v1255 = vunpack.c.l.b16 %v1118
    %v1256 = vunpack.c.l.b16 %v1119
    %v1257 = vunpack.c.l.b16 %v1120
    %v1258 = vunpack.c.l.b16 %v1121
    %v1259 = vunpack.c.l.b16 %v1122
    %v1260 = vunpack.c.l.b16 %v1123
    %v1261 = vunpack.c.l.b16 %v1124
    %v1262 = vpack.c.b16 %v1247, %v1246
    %v1263 = vpack.c.b16 %v1249, %v1248
    %v1264 = vpack.c.b16 %v1251, %v1250
    %v1265 = vpack.c.b16 %v1253, %v1252
    %v1266 = vpack.c.b16 %v1255, %v1254
    %v1267 = vpack.c.b16 %v1257, %v1256
    %v1268 = vpack.c.b16 %v1259, %v1258
    %v1269 = vpack.c.b16 %v1261, %v1260
    %1278 = vmatprep.subr.bf16.mxu0 0
    %1279 = vmatpush1.bf16.msra.mxu0 %v1262
    %1280 = vmatprep.subr.bf16.mxu0 0
    %1281 = vmatpush1.bf16.msra.mxu0 %v1263
    %1282 = vmatprep.subr.bf16.mxu0 0
    %1283 = vmatpush1.bf16.msra.mxu0 %v1264
    %1284 = vmatprep.subr.bf16.mxu0 0
    %1285 = vmatpush1.bf16.msra.mxu0 %v1265
    %1286 = vmatprep.subr.bf16.mxu0 0
    %1287 = vmatpush1.bf16.msra.mxu0 %v1266
    %1288 = vmatprep.subr.bf16.mxu0 0
    %1289 = vmatpush1.bf16.msra.mxu0 %v1267
    %1290 = vmatprep.subr.bf16.mxu0 0
    %1291 = vmatpush1.bf16.msra.mxu0 %v1268
    %1292 = vmatprep.subr.bf16.mxu0 0
    %1293 = vmatpush1.bf16.msra.mxu0 %v1269
    %1294 = vmatprep.subr.bf16.mxu0 0
    %1295 = vmatpush1.bf16.msra.mxu0 0
    %1296 = vmatprep.subr.bf16.mxu0 0
    %1297 = vmatpush1.bf16.msra.mxu0 0
    %1298 = vmatprep.subr.bf16.mxu0 0
    %1299 = vmatpush1.bf16.msra.mxu0 0
    %1300 = vmatprep.subr.bf16.mxu0 0
    %1301 = vmatpush1.bf16.msra.mxu0 0
    %1302 = vmatprep.subr.bf16.mxu0 0
    %1303 = vmatpush1.bf16.msra.mxu0 0
    %1304 = vmatprep.subr.bf16.mxu0 0
    %1305 = vmatpush1.bf16.msra.mxu0 0
    %1306 = vmatprep.subr.bf16.mxu0 0
    %1307 = vmatpush1.bf16.msra.mxu0 0
    %1308 = vmatprep.subr.bf16.mxu0 0
    %1309 = vmatpush1.bf16.msra.mxu0 0
    %1310 = vmatprep.mubr.bf16.mxu0 0
    %1311 = vmatmul.mubr.bf16.gmra.mrb[0].mxu0 %v1107
    %v1312 = vpop.f32.mrb[0].mxu0
    %v1313 = vadd.f32 %v1225, %v1312
    %v1314 = vpop.f32.mrb[0].mxu0
    %v1315 = vpop.f32.mrb[0].mxu0
    %v1316 = vpop.f32.mrb[0].mxu0
    %1317 = vdwg.mxu0
    %s1318 = scalar_lea.vmem %s10, 1
    %v1319 = vld [vmem:[%s1318] sm:$0x1]
    %v1321 = vlaneseq
    %v1322 = vshrl.u32 %v1321, 7
    %v1323 = vsub.s32 0, %v1322
    %v1324 = vrot.slane %v1319, %v1323
    %v1326 = vadd.f32 %v1313, %v1324
    %v1327 = vmax.f32 %v1326, 0.0
    %v1328 = vpack.c.bf16 %v1327, %v1327
    %s1329 = scalar_lea.vmem [#allocation10], 64
    %v1330 = vld [vmem:[%s1329] sm:$0xf]
    %v1331 = vld [vmem:[%s1329 + $0x4] sm:$0xf]
    %v1332 = vld [vmem:[%s1329 + $0x8] sm:$0xf]
    %v1333 = vld [vmem:[%s1329 + $0xc] sm:$0xf]
    %v1334 = vld [vmem:[%s1329 + $0x10] sm:$0xf]
    %v1335 = vld [vmem:[%s1329 + $0x14] sm:$0xf]
    %v1336 = vld [vmem:[%s1329 + $0x18] sm:$0xf]
    %v1337 = vld [vmem:[%s1329 + $0x1c] sm:$0xf]
    %v1338 = vld [vmem:[%s1329 + $0x20] sm:$0xf]
    %v1339 = vld [vmem:[%s1329 + $0x24] sm:$0xf]
    %v1340 = vld [vmem:[%s1329 + $0x28] sm:$0xf]
    %v1341 = vld [vmem:[%s1329 + $0x2c] sm:$0xf]
    %v1342 = vld [vmem:[%s1329 + $0x30] sm:$0xf]
    %v1343 = vld [vmem:[%s1329 + $0x34] sm:$0xf]
    %v1344 = vld [vmem:[%s1329 + $0x38] sm:$0xf]
    %v1345 = vld [vmem:[%s1329 + $0x3c] sm:$0xf]
    %s1346 = scalar_lea.vmem %s12, 1
    %v1347 = vld [vmem:[%s1346] sm:$0x1]
    %v1349 = vlaneseq
    %v1350 = vshrl.u32 %v1349, 7
    %v1351 = vsub.s32 0, %v1350
    %v1352 = vrot.slane %v1347, %v1351
    %v1370 = vunpack.c.l.b16 %v1330
    %v1371 = vunpack.c.l.b16 %v1331
    %v1372 = vunpack.c.l.b16 %v1332
    %v1373 = vunpack.c.l.b16 %v1333
    %v1374 = vunpack.c.l.b16 %v1334
    %v1375 = vunpack.c.l.b16 %v1335
    %v1376 = vunpack.c.l.b16 %v1336
    %v1377 = vunpack.c.l.b16 %v1337
    %v1378 = vunpack.c.l.b16 %v1338
    %v1379 = vunpack.c.l.b16 %v1339
    %v1380 = vunpack.c.l.b16 %v1340
    %v1381 = vunpack.c.l.b16 %v1341
    %v1382 = vunpack.c.l.b16 %v1342
    %v1383 = vunpack.c.l.b16 %v1343
    %v1384 = vunpack.c.l.b16 %v1344
    %v1385 = vunpack.c.l.b16 %v1345
    %v1386 = vpack.c.b16 %v1371, %v1370
    %v1387 = vpack.c.b16 %v1373, %v1372
    %v1388 = vpack.c.b16 %v1375, %v1374
    %v1389 = vpack.c.b16 %v1377, %v1376
    %v1390 = vpack.c.b16 %v1379, %v1378
    %v1391 = vpack.c.b16 %v1381, %v1380
    %v1392 = vpack.c.b16 %v1383, %v1382
    %v1393 = vpack.c.b16 %v1385, %v1384
    %1402 = vmatprep.subr.bf16.mxu0 0
    %1403 = vmatpush1.bf16.msra.mxu0 %v1386
    %1404 = vmatprep.subr.bf16.mxu0 0
    %1405 = vmatpush1.bf16.msra.mxu0 %v1387
    %1406 = vmatprep.subr.bf16.mxu0 0
    %1407 = vmatpush1.bf16.msra.mxu0 %v1388
    %1408 = vmatprep.subr.bf16.mxu0 0
    %1409 = vmatpush1.bf16.msra.mxu0 %v1389
    %1410 = vmatprep.subr.bf16.mxu0 0
    %1411 = vmatpush1.bf16.msra.mxu0 %v1390
    %1412 = vmatprep.subr.bf16.mxu0 0
    %1413 = vmatpush1.bf16.msra.mxu0 %v1391
    %1414 = vmatprep.subr.bf16.mxu0 0
    %1415 = vmatpush1.bf16.msra.mxu0 %v1392
    %1416 = vmatprep.subr.bf16.mxu0 0
    %1417 = vmatpush1.bf16.msra.mxu0 %v1393
    %1418 = vmatprep.subr.bf16.mxu0 0
    %1419 = vmatpush1.bf16.msra.mxu0 0
    %1420 = vmatprep.subr.bf16.mxu0 0
    %1421 = vmatpush1.bf16.msra.mxu0 0
    %1422 = vmatprep.subr.bf16.mxu0 0
    %1423 = vmatpush1.bf16.msra.mxu0 0
    %1424 = vmatprep.subr.bf16.mxu0 0
    %1425 = vmatpush1.bf16.msra.mxu0 0
    %1426 = vmatprep.subr.bf16.mxu0 0
    %1427 = vmatpush1.bf16.msra.mxu0 0
    %1428 = vmatprep.subr.bf16.mxu0 0
    %1429 = vmatpush1.bf16.msra.mxu0 0
    %1430 = vmatprep.subr.bf16.mxu0 0
    %1431 = vmatpush1.bf16.msra.mxu0 0
    %1432 = vmatprep.subr.bf16.mxu0 0
    %1433 = vmatpush1.bf16.msra.mxu0 0
    %1434 = vmatprep.mubr.bf16.mxu0 0
    %1435 = vmatmul.mubr.bf16.gmra.mrb[0].mxu0 %v1328
    %v1436 = vpop.f32.mrb[0].mxu0
    %v1437 = vadd.f32 %v1352, %v1436
    %v1438 = vpop.f32.mrb[0].mxu0
    %v1439 = vpop.f32.mrb[0].mxu0
    %v1440 = vpop.f32.mrb[0].mxu0
    %1441 = vdwg.mxu0
    %v1442 = vmax.f32 %v1437, 0.0
    %v1443 = vadd.f32 %v1327, %v1442
    %v1444 = vpack.c.bf16 %v1443, %v1443
    %s1445 = scalar_lea.vmem [#allocation12], 64
    %v1446 = vld [vmem:[%s1445] sm:$0xf]
    %v1447 = vld [vmem:[%s1445 + $0x4] sm:$0xf]
    %v1448 = vld [vmem:[%s1445 + $0x8] sm:$0xf]
    %v1449 = vld [vmem:[%s1445 + $0xc] sm:$0xf]
    %v1450 = vld [vmem:[%s1445 + $0x10] sm:$0xf]
    %v1451 = vld [vmem:[%s1445 + $0x14] sm:$0xf]
    %v1452 = vld [vmem:[%s1445 + $0x18] sm:$0xf]
    %v1453 = vld [vmem:[%s1445 + $0x1c] sm:$0xf]
    %v1454 = vld [vmem:[%s1445 + $0x20] sm:$0xf]
    %v1455 = vld [vmem:[%s1445 + $0x24] sm:$0xf]
    %v1456 = vld [vmem:[%s1445 + $0x28] sm:$0xf]
    %v1457 = vld [vmem:[%s1445 + $0x2c] sm:$0xf]
    %v1458 = vld [vmem:[%s1445 + $0x30] sm:$0xf]
    %v1459 = vld [vmem:[%s1445 + $0x34] sm:$0xf]
    %v1460 = vld [vmem:[%s1445 + $0x38] sm:$0xf]
    %v1461 = vld [vmem:[%s1445 + $0x3c] sm:$0xf]
    %s1462 = scalar_lea.vmem %s14, 1
    %v1463 = vld [vmem:[%s1462] sm:$0x1]
    %v1465 = vlaneseq
    %v1466 = vshrl.u32 %v1465, 7
    %v1467 = vsub.s32 0, %v1466
    %v1468 = vrot.slane %v1463, %v1467
    %v1486 = vunpack.c.l.b16 %v1446
    %v1487 = vunpack.c.l.b16 %v1447
    %v1488 = vunpack.c.l.b16 %v1448
    %v1489 = vunpack.c.l.b16 %v1449
    %v1490 = vunpack.c.l.b16 %v1450
    %v1491 = vunpack.c.l.b16 %v1451
    %v1492 = vunpack.c.l.b16 %v1452
    %v1493 = vunpack.c.l.b16 %v1453
    %v1494 = vunpack.c.l.b16 %v1454
    %v1495 = vunpack.c.l.b16 %v1455
    %v1496 = vunpack.c.l.b16 %v1456
    %v1497 = vunpack.c.l.b16 %v1457
    %v1498 = vunpack.c.l.b16 %v1458
    %v1499 = vunpack.c.l.b16 %v1459
    %v1500 = vunpack.c.l.b16 %v1460
    %v1501 = vunpack.c.l.b16 %v1461
    %v1502 = vpack.c.b16 %v1487, %v1486
    %v1503 = vpack.c.b16 %v1489, %v1488
    %v1504 = vpack.c.b16 %v1491, %v1490
    %v1505 = vpack.c.b16 %v1493, %v1492
    %v1506 = vpack.c.b16 %v1495, %v1494
    %v1507 = vpack.c.b16 %v1497, %v1496
    %v1508 = vpack.c.b16 %v1499, %v1498
    %v1509 = vpack.c.b16 %v1501, %v1500
    %1518 = vmatprep.subr.bf16.mxu0 0
    %1519 = vmatpush1.bf16.msra.mxu0 %v1502
    %1520 = vmatprep.subr.bf16.mxu0 0
    %1521 = vmatpush1.bf16.msra.mxu0 %v1503
    %1522 = vmatprep.subr.bf16.mxu0 0
    %1523 = vmatpush1.bf16.msra.mxu0 %v1504
    %1524 = vmatprep.subr.bf16.mxu0 0
    %1525 = vmatpush1.bf16.msra.mxu0 %v1505
    %1526 = vmatprep.subr.bf16.mxu0 0
    %1527 = vmatpush1.bf16.msra.mxu0 %v1506
    %1528 = vmatprep.subr.bf16.mxu0 0
    %1529 = vmatpush1.bf16.msra.mxu0 %v1507
    %1530 = vmatprep.subr.bf16.mxu0 0
    %1531 = vmatpush1.bf16.msra.mxu0 %v1508
    %1532 = vmatprep.subr.bf16.mxu0 0
    %1533 = vmatpush1.bf16.msra.mxu0 %v1509
    %1534 = vmatprep.subr.bf16.mxu0 0
    %1535 = vmatpush1.bf16.msra.mxu0 0
    %1536 = vmatprep.subr.bf16.mxu0 0
    %1537 = vmatpush1.bf16.msra.mxu0 0
    %1538 = vmatprep.subr.bf16.mxu0 0
    %1539 = vmatpush1.bf16.msra.mxu0 0
    %1540 = vmatprep.subr.bf16.mxu0 0
    %1541 = vmatpush1.bf16.msra.mxu0 0
    %1542 = vmatprep.subr.bf16.mxu0 0
    %1543 = vmatpush1.bf16.msra.mxu0 0
    %1544 = vmatprep.subr.bf16.mxu0 0
    %1545 = vmatpush1.bf16.msra.mxu0 0
    %1546 = vmatprep.subr.bf16.mxu0 0
    %1547 = vmatpush1.bf16.msra.mxu0 0
    %1548 = vmatprep.subr.bf16.mxu0 0
    %1549 = vmatpush1.bf16.msra.mxu0 0
    %1550 = vmatprep.mubr.bf16.mxu0 0
    %1551 = vmatmul.mubr.bf16.gmra.mrb[0].mxu0 %v1444
    %v1552 = vpop.f32.mrb[0].mxu0
    %v1553 = vadd.f32 %v1468, %v1552
    %v1554 = vpop.f32.mrb[0].mxu0
    %v1555 = vpop.f32.mrb[0].mxu0
    %v1556 = vpop.f32.mrb[0].mxu0
    %1557 = vdwg.mxu0
    %v1558 = vtanh.pop %v1553
    %s1559 = scalar_lea.vmem [#allocation13], 64
    %v1560 = vld [vmem:[%s1559] sm:$0xf]
    %v1561 = vld [vmem:[%s1559 + $0x4] sm:$0xf]
    %v1562 = vld [vmem:[%s1559 + $0x8] sm:$0xf]
    %v1563 = vld [vmem:[%s1559 + $0xc] sm:$0xf]
    %v1564 = vld [vmem:[%s1559 + $0x10] sm:$0xf]
    %v1565 = vld [vmem:[%s1559 + $0x14] sm:$0xf]
    %v1566 = vld [vmem:[%s1559 + $0x18] sm:$0xf]
    %v1567 = vld [vmem:[%s1559 + $0x1c] sm:$0xf]
    %v1568 = vld [vmem:[%s1559 + $0x20] sm:$0xf]
    %v1569 = vld [vmem:[%s1559 + $0x24] sm:$0xf]
    %v1570 = vld [vmem:[%s1559 + $0x28] sm:$0xf]
    %v1571 = vld [vmem:[%s1559 + $0x2c] sm:$0xf]
    %v1572 = vld [vmem:[%s1559 + $0x30] sm:$0xf]
    %v1573 = vld [vmem:[%s1559 + $0x34] sm:$0xf]
    %v1574 = vld [vmem:[%s1559 + $0x38] sm:$0xf]
    %v1575 = vld [vmem:[%s1559 + $0x3c] sm:$0xf]
    %s1576 = scalar_lea.vmem %s16, 1
    %v1577 = vld [vmem:[%s1576] sm:$0x1]
    %v1579 = vlaneseq
    %v1580 = vshrl.u32 %v1579, 7
    %v1581 = vsub.s32 0, %v1580
    %v1582 = vrot.slane %v1577, %v1581
    %v1600 = vunpack.c.l.b16 %v1560
    %v1601 = vunpack.c.l.b16 %v1561
    %v1602 = vunpack.c.l.b16 %v1562
    %v1603 = vunpack.c.l.b16 %v1563
    %v1604 = vunpack.c.l.b16 %v1564
    %v1605 = vunpack.c.l.b16 %v1565
    %v1606 = vunpack.c.l.b16 %v1566
    %v1607 = vunpack.c.l.b16 %v1567
    %v1608 = vunpack.c.l.b16 %v1568
    %v1609 = vunpack.c.l.b16 %v1569
    %v1610 = vunpack.c.l.b16 %v1570
    %v1611 = vunpack.c.l.b16 %v1571
    %v1612 = vunpack.c.l.b16 %v1572
    %v1613 = vunpack.c.l.b16 %v1573
    %v1614 = vunpack.c.l.b16 %v1574
    %v1615 = vunpack.c.l.b16 %v1575
    %v1616 = vpack.c.b16 %v1601, %v1600
    %v1617 = vpack.c.b16 %v1603, %v1602
    %v1618 = vpack.c.b16 %v1605, %v1604
    %v1619 = vpack.c.b16 %v1607, %v1606
    %v1620 = vpack.c.b16 %v1609, %v1608
    %v1621 = vpack.c.b16 %v1611, %v1610
    %v1622 = vpack.c.b16 %v1613, %v1612
    %v1623 = vpack.c.b16 %v1615, %v1614
    %1632 = vmatprep.subr.bf16.mxu0 0
    %1633 = vmatpush1.bf16.msra.mxu0 %v1616
    %1634 = vmatprep.subr.bf16.mxu0 0
    %1635 = vmatpush1.bf16.msra.mxu0 %v1617
    %1636 = vmatprep.subr.bf16.mxu0 0
    %1637 = vmatpush1.bf16.msra.mxu0 %v1618
    %1638 = vmatprep.subr.bf16.mxu0 0
    %1639 = vmatpush1.bf16.msra.mxu0 %v1619
    %1640 = vmatprep.subr.bf16.mxu0 0
    %1641 = vmatpush1.bf16.msra.mxu0 %v1620
    %1642 = vmatprep.subr.bf16.mxu0 0
    %1643 = vmatpush1.bf16.msra.mxu0 %v1621
    %1644 = vmatprep.subr.bf16.mxu0 0
    %1645 = vmatpush1.bf16.msra.mxu0 %v1622
    %1646 = vmatprep.subr.bf16.mxu0 0
    %1647 = vmatpush1.bf16.msra.mxu0 %v1623
    %1648 = vmatprep.subr.bf16.mxu0 0
    %1649 = vmatpush1.bf16.msra.mxu0 0
    %1650 = vmatprep.subr.bf16.mxu0 0
    %1651 = vmatpush1.bf16.msra.mxu0 0
    %1652 = vmatprep.subr.bf16.mxu0 0
    %1653 = vmatpush1.bf16.msra.mxu0 0
    %1654 = vmatprep.subr.bf16.mxu0 0
    %1655 = vmatpush1.bf16.msra.mxu0 0
    %1656 = vmatprep.subr.bf16.mxu0 0
    %1657 = vmatpush1.bf16.msra.mxu0 0
    %1658 = vmatprep.subr.bf16.mxu0 0
    %1659 = vmatpush1.bf16.msra.mxu0 0
    %1660 = vmatprep.subr.bf16.mxu0 0
    %1661 = vmatpush1.bf16.msra.mxu0 0
    %1662 = vmatprep.subr.bf16.mxu0 0
    %1663 = vmatpush1.bf16.msra.mxu0 0
    %1664 = vmatprep.mubr.bf16.mxu0 0
    %1665 = vmatmul.mubr.bf16.gmra.mrb[0].mxu0 %v1444
    %v1666 = vpop.f32.mrb[0].mxu0
    %v1667 = vadd.f32 %v1582, %v1666
    %v1668 = vpop.f32.mrb[0].mxu0
    %v1669 = vpop.f32.mrb[0].mxu0
    %v1670 = vpop.f32.mrb[0].mxu0
    %1671 = vdwg.mxu0
    %s1672 = scalar_lea.vmem %s17, 1
    %v1673 = vld [vmem:[%s1672] sm:$0x1]
    %v1675 = vlaneseq
    %v1676 = vshrl.u32 %v1675, 7
    %v1677 = vsub.s32 0, %v1676
    %v1678 = vrot.slane %v1673, %v1677
    %v1680 = vadd.f32 %v1558, %v1678
    %v1681 = vmul.f32 %v1680, 1.442695
    %v1682 = vpow.pop %v1681
    %v1683 = vmul.f32 %v1105, %v1682
    %v1684 = vadd.f32 %v1683, %v1667
    %v1685 = vadd.f32 %v1106, %v1558
    %v1686 = vpack.c.bf16 %v1684, %v1684
    %s1687 = scalar_lea.vmem [#allocation7], 128
    %v1688 = vld [vmem:[%s1687] sm:$0xf]
    %v1689 = vld [vmem:[%s1687 + $0x4] sm:$0xf]
    %v1690 = vld [vmem:[%s1687 + $0x8] sm:$0xf]
    %v1691 = vld [vmem:[%s1687 + $0xc] sm:$0xf]
    %v1692 = vld [vmem:[%s1687 + $0x10] sm:$0xf]
    %v1693 = vld [vmem:[%s1687 + $0x14] sm:$0xf]
    %v1694 = vld [vmem:[%s1687 + $0x18] sm:$0xf]
    %v1695 = vld [vmem:[%s1687 + $0x1c] sm:$0xf]
    %v1696 = vld [vmem:[%s1687 + $0x20] sm:$0xf]
    %v1697 = vld [vmem:[%s1687 + $0x24] sm:$0xf]
    %v1698 = vld [vmem:[%s1687 + $0x28] sm:$0xf]
    %v1699 = vld [vmem:[%s1687 + $0x2c] sm:$0xf]
    %v1700 = vld [vmem:[%s1687 + $0x30] sm:$0xf]
    %v1701 = vld [vmem:[%s1687 + $0x34] sm:$0xf]
    %v1702 = vld [vmem:[%s1687 + $0x38] sm:$0xf]
    %v1703 = vld [vmem:[%s1687 + $0x3c] sm:$0xf]
    %s1704 = scalar_lea.vmem [#allocation9], 128
    %v1705 = vld [vmem:[%s1704] sm:$0xf]
    %v1706 = vld [vmem:[%s1704 + $0x4] sm:$0xf]
    %v1707 = vld [vmem:[%s1704 + $0x8] sm:$0xf]
    %v1708 = vld [vmem:[%s1704 + $0xc] sm:$0xf]
    %v1709 = vld [vmem:[%s1704 + $0x10] sm:$0xf]
    %v1710 = vld [vmem:[%s1704 + $0x14] sm:$0xf]
    %v1711 = vld [vmem:[%s1704 + $0x18] sm:$0xf]
    %v1712 = vld [vmem:[%s1704 + $0x1c] sm:$0xf]
    %v1713 = vld [vmem:[%s1704 + $0x20] sm:$0xf]
    %v1714 = vld [vmem:[%s1704 + $0x24] sm:$0xf]
    %v1715 = vld [vmem:[%s1704 + $0x28] sm:$0xf]
    %v1716 = vld [vmem:[%s1704 + $0x2c] sm:$0xf]
    %v1717 = vld [vmem:[%s1704 + $0x30] sm:$0xf]
    %v1718 = vld [vmem:[%s1704 + $0x34] sm:$0xf]
    %v1719 = vld [vmem:[%s1704 + $0x38] sm:$0xf]
    %v1720 = vld [vmem:[%s1704 + $0x3c] sm:$0xf]
    %v1737 = vunpack.c.l.b16 %v1705
    %v1738 = vunpack.c.l.b16 %v1706
    %v1739 = vunpack.c.l.b16 %v1707
    %v1740 = vunpack.c.l.b16 %v1708
    %v1741 = vunpack.c.l.b16 %v1709
    %v1742 = vunpack.c.l.b16 %v1710
    %v1743 = vunpack.c.l.b16 %v1711
    %v1744 = vunpack.c.l.b16 %v1712
    %v1745 = vunpack.c.l.b16 %v1713
    %v1746 = vunpack.c.l.b16 %v1714
    %v1747 = vunpack.c.l.b16 %v1715
    %v1748 = vunpack.c.l.b16 %v1716
    %v1749 = vunpack.c.l.b16 %v1717
    %v1750 = vunpack.c.l.b16 %v1718
    %v1751 = vunpack.c.l.b16 %v1719
    %v1752 = vunpack.c.l.b16 %v1720
    %v1753 = vpack.c.b16 %v1738, %v1737
    %v1754 = vpack.c.b16 %v1740, %v1739
    %v1755 = vpack.c.b16 %v1742, %v1741
    %v1756 = vpack.c.b16 %v1744, %v1743
    %v1757 = vpack.c.b16 %v1746, %v1745
    %v1758 = vpack.c.b16 %v1748, %v1747
    %v1759 = vpack.c.b16 %v1750, %v1749
    %v1760 = vpack.c.b16 %v1752, %v1751
    %1769 = vmatprep.subr.bf16.mxu0 0
    %1770 = vmatpush1.bf16.msra.mxu0 %v1753
    %1771 = vmatprep.subr.bf16.mxu0 0
    %1772 = vmatpush1.bf16.msra.mxu0 %v1754
    %1773 = vmatprep.subr.bf16.mxu0 0
    %1774 = vmatpush1.bf16.msra.mxu0 %v1755
    %1775 = vmatprep.subr.bf16.mxu0 0
    %1776 = vmatpush1.bf16.msra.mxu0 %v1756
    %1777 = vmatprep.subr.bf16.mxu0 0
    %1778 = vmatpush1.bf16.msra.mxu0 %v1757
    %1779 = vmatprep.subr.bf16.mxu0 0
    %1780 = vmatpush1.bf16.msra.mxu0 %v1758
    %1781 = vmatprep.subr.bf16.mxu0 0
    %1782 = vmatpush1.bf16.msra.mxu0 %v1759
    %1783 = vmatprep.subr.bf16.mxu0 0
    %1784 = vmatpush1.bf16.msra.mxu0 %v1760
    %1785 = vmatprep.subr.bf16.mxu0 0
    %1786 = vmatpush1.bf16.msra.mxu0 0
    %1787 = vmatprep.subr.bf16.mxu0 0
    %1788 = vmatpush1.bf16.msra.mxu0 0
    %1789 = vmatprep.subr.bf16.mxu0 0
    %1790 = vmatpush1.bf16.msra.mxu0 0
    %1791 = vmatprep.subr.bf16.mxu0 0
    %1792 = vmatpush1.bf16.msra.mxu0 0
    %1793 = vmatprep.subr.bf16.mxu0 0
    %1794 = vmatpush1.bf16.msra.mxu0 0
    %1795 = vmatprep.subr.bf16.mxu0 0
    %1796 = vmatpush1.bf16.msra.mxu0 0
    %1797 = vmatprep.subr.bf16.mxu0 0
    %1798 = vmatpush1.bf16.msra.mxu0 0
    %1799 = vmatprep.subr.bf16.mxu0 0
    %1800 = vmatpush1.bf16.msra.mxu0 0
    %1801 = vmatprep.mubr.bf16.mxu0 0
    %1802 = vmatmul.mubr.bf16.gmra.mrb[0].mxu0 %v191
    %v1803 = vpop.f32.mrb[0].mxu0
    %v1804 = vadd.f32 0.0, %v1803
    %v1805 = vpop.f32.mrb[0].mxu0
    %v1806 = vpop.f32.mrb[0].mxu0
    %v1807 = vpop.f32.mrb[0].mxu0
    %1808 = vdwg.mxu0
    %v1825 = vunpack.c.l.b16 %v1688
    %v1826 = vunpack.c.l.b16 %v1689
    %v1827 = vunpack.c.l.b16 %v1690
    %v1828 = vunpack.c.l.b16 %v1691
    %v1829 = vunpack.c.l.b16 %v1692
    %v1830 = vunpack.c.l.b16 %v1693
    %v1831 = vunpack.c.l.b16 %v1694
    %v1832 = vunpack.c.l.b16 %v1695
    %v1833 = vunpack.c.l.b16 %v1696
    %v1834 = vunpack.c.l.b16 %v1697
    %v1835 = vunpack.c.l.b16 %v1698
    %v1836 = vunpack.c.l.b16 %v1699
    %v1837 = vunpack.c.l.b16 %v1700
    %v1838 = vunpack.c.l.b16 %v1701
    %v1839 = vunpack.c.l.b16 %v1702
    %v1840 = vunpack.c.l.b16 %v1703
    %v1841 = vpack.c.b16 %v1826, %v1825
    %v1842 = vpack.c.b16 %v1828, %v1827
    %v1843 = vpack.c.b16 %v1830, %v1829
    %v1844 = vpack.c.b16 %v1832, %v1831
    %v1845 = vpack.c.b16 %v1834, %v1833
    %v1846 = vpack.c.b16 %v1836, %v1835
    %v1847 = vpack.c.b16 %v1838, %v1837
    %v1848 = vpack.c.b16 %v1840, %v1839
    %1857 = vmatprep.subr.bf16.mxu0 0
    %1858 = vmatpush1.bf16.msra.mxu0 %v1841
    %1859 = vmatprep.subr.bf16.mxu0 0
    %1860 = vmatpush1.bf16.msra.mxu0 %v1842
    %1861 = vmatprep.subr.bf16.mxu0 0
    %1862 = vmatpush1.bf16.msra.mxu0 %v1843
    %1863 = vmatprep.subr.bf16.mxu0 0
    %1864 = vmatpush1.bf16.msra.mxu0 %v1844
    %1865 = vmatprep.subr.bf16.mxu0 0
    %1866 = vmatpush1.bf16.msra.mxu0 %v1845
    %1867 = vmatprep.subr.bf16.mxu0 0
    %1868 = vmatpush1.bf16.msra.mxu0 %v1846
    %1869 = vmatprep.subr.bf16.mxu0 0
    %1870 = vmatpush1.bf16.msra.mxu0 %v1847
    %1871 = vmatprep.subr.bf16.mxu0 0
    %1872 = vmatpush1.bf16.msra.mxu0 %v1848
    %1873 = vmatprep.subr.bf16.mxu0 0
    %1874 = vmatpush1.bf16.msra.mxu0 0
    %1875 = vmatprep.subr.bf16.mxu0 0
    %1876 = vmatpush1.bf16.msra.mxu0 0
    %1877 = vmatprep.subr.bf16.mxu0 0
    %1878 = vmatpush1.bf16.msra.mxu0 0
    %1879 = vmatprep.subr.bf16.mxu0 0
    %1880 = vmatpush1.bf16.msra.mxu0 0
    %1881 = vmatprep.subr.bf16.mxu0 0
    %1882 = vmatpush1.bf16.msra.mxu0 0
    %1883 = vmatprep.subr.bf16.mxu0 0
    %1884 = vmatpush1.bf16.msra.mxu0 0
    %1885 = vmatprep.subr.bf16.mxu0 0
    %1886 = vmatpush1.bf16.msra.mxu0 0
    %1887 = vmatprep.subr.bf16.mxu0 0
    %1888 = vmatpush1.bf16.msra.mxu0 0
    %1889 = vmatprep.mubr.bf16.mxu0 0
    %1890 = vmatmul.mubr.bf16.gmra.mrb[0].mxu0 %v1686
    %v1891 = vpop.f32.mrb[0].mxu0
    %v1892 = vadd.f32 %v1804, %v1891
    %v1893 = vpop.f32.mrb[0].mxu0
    %v1894 = vpop.f32.mrb[0].mxu0
    %v1895 = vpop.f32.mrb[0].mxu0
    %1896 = vdwg.mxu0
    %s1897 = scalar_lea.vmem %s10, 2
    %v1898 = vld [vmem:[%s1897] sm:$0x1]
    %v1900 = vlaneseq
    %v1901 = vshrl.u32 %v1900, 7
    %v1902 = vsub.s32 0, %v1901
    %v1903 = vrot.slane %v1898, %v1902
    %v1905 = vadd.f32 %v1892, %v1903
    %v1906 = vmax.f32 %v1905, 0.0
    %v1907 = vpack.c.bf16 %v1906, %v1906
    %s1908 = scalar_lea.vmem [#allocation10], 128
    %v1909 = vld [vmem:[%s1908] sm:$0xf]
    %v1910 = vld [vmem:[%s1908 + $0x4] sm:$0xf]
    %v1911 = vld [vmem:[%s1908 + $0x8] sm:$0xf]
    %v1912 = vld [vmem:[%s1908 + $0xc] sm:$0xf]
    %v1913 = vld [vmem:[%s1908 + $0x10] sm:$0xf]
    %v1914 = vld [vmem:[%s1908 + $0x14] sm:$0xf]
    %v1915 = vld [vmem:[%s1908 + $0x18] sm:$0xf]
    %v1916 = vld [vmem:[%s1908 + $0x1c] sm:$0xf]
    %v1917 = vld [vmem:[%s1908 + $0x20] sm:$0xf]
    %v1918 = vld [vmem:[%s1908 + $0x24] sm:$0xf]
    %v1919 = vld [vmem:[%s1908 + $0x28] sm:$0xf]
    %v1920 = vld [vmem:[%s1908 + $0x2c] sm:$0xf]
    %v1921 = vld [vmem:[%s1908 + $0x30] sm:$0xf]
    %v1922 = vld [vmem:[%s1908 + $0x34] sm:$0xf]
    %v1923 = vld [vmem:[%s1908 + $0x38] sm:$0xf]
    %v1924 = vld [vmem:[%s1908 + $0x3c] sm:$0xf]
    %s1925 = scalar_lea.vmem %s12, 2
    %v1926 = vld [vmem:[%s1925] sm:$0x1]
    %v1928 = vlaneseq
    %v1929 = vshrl.u32 %v1928, 7
    %v1930 = vsub.s32 0, %v1929
    %v1931 = vrot.slane %v1926, %v1930
    %v1949 = vunpack.c.l.b16 %v1909
    %v1950 = vunpack.c.l.b16 %v1910
    %v1951 = vunpack.c.l.b16 %v1911
    %v1952 = vunpack.c.l.b16 %v1912
    %v1953 = vunpack.c.l.b16 %v1913
    %v1954 = vunpack.c.l.b16 %v1914
    %v1955 = vunpack.c.l.b16 %v1915
    %v1956 = vunpack.c.l.b16 %v1916
    %v1957 = vunpack.c.l.b16 %v1917
    %v1958 = vunpack.c.l.b16 %v1918
    %v1959 = vunpack.c.l.b16 %v1919
    %v1960 = vunpack.c.l.b16 %v1920
    %v1961 = vunpack.c.l.b16 %v1921
    %v1962 = vunpack.c.l.b16 %v1922
    %v1963 = vunpack.c.l.b16 %v1923
    %v1964 = vunpack.c.l.b16 %v1924
    %v1965 = vpack.c.b16 %v1950, %v1949
    %v1966 = vpack.c.b16 %v1952, %v1951
    %v1967 = vpack.c.b16 %v1954, %v1953
    %v1968 = vpack.c.b16 %v1956, %v1955
    %v1969 = vpack.c.b16 %v1958, %v1957
    %v1970 = vpack.c.b16 %v1960, %v1959
    %v1971 = vpack.c.b16 %v1962, %v1961
    %v1972 = vpack.c.b16 %v1964, %v1963
    %1981 = vmatprep.subr.bf16.mxu0 0
    %1982 = vmatpush1.bf16.msra.mxu0 %v1965
    %1983 = vmatprep.subr.bf16.mxu0 0
    %1984 = vmatpush1.bf16.msra.mxu0 %v1966
    %1985 = vmatprep.subr.bf16.mxu0 0
    %1986 = vmatpush1.bf16.msra.mxu0 %v1967
    %1987 = vmatprep.subr.bf16.mxu0 0
    %1988 = vmatpush1.bf16.msra.mxu0 %v1968
    %1989 = vmatprep.subr.bf16.mxu0 0
    %1990 = vmatpush1.bf16.msra.mxu0 %v1969
    %1991 = vmatprep.subr.bf16.mxu0 0
    %1992 = vmatpush1.bf16.msra.mxu0 %v1970
    %1993 = vmatprep.subr.bf16.mxu0 0
    %1994 = vmatpush1.bf16.msra.mxu0 %v1971
    %1995 = vmatprep.subr.bf16.mxu0 0
    %1996 = vmatpush1.bf16.msra.mxu0 %v1972
    %1997 = vmatprep.subr.bf16.mxu0 0
    %1998 = vmatpush1.bf16.msra.mxu0 0
    %1999 = vmatprep.subr.bf16.mxu0 0
    %2000 = vmatpush1.bf16.msra.mxu0 0
    %2001 = vmatprep.subr.bf16.mxu0 0
    %2002 = vmatpush1.bf16.msra.mxu0 0
    %2003 = vmatprep.subr.bf16.mxu0 0
    %2004 = vmatpush1.bf16.msra.mxu0 0
    %2005 = vmatprep.subr.bf16.mxu0 0
    %2006 = vmatpush1.bf16.msra.mxu0 0
    %2007 = vmatprep.subr.bf16.mxu0 0
    %2008 = vmatpush1.bf16.msra.mxu0 0
    %2009 = vmatprep.subr.bf16.mxu0 0
    %2010 = vmatpush1.bf16.msra.mxu0 0
    %2011 = vmatprep.subr.bf16.mxu0 0
    %2012 = vmatpush1.bf16.msra.mxu0 0
    %2013 = vmatprep.mubr.bf16.mxu0 0
    %2014 = vmatmul.mubr.bf16.gmra.mrb[0].mxu0 %v1907
    %v2015 = vpop.f32.mrb[0].mxu0
    %v2016 = vadd.f32 %v1931, %v2015
    %v2017 = vpop.f32.mrb[0].mxu0
    %v2018 = vpop.f32.mrb[0].mxu0
    %v2019 = vpop.f32.mrb[0].mxu0
    %2020 = vdwg.mxu0
    %v2021 = vmax.f32 %v2016, 0.0
    %v2022 = vadd.f32 %v1906, %v2021
    %v2023 = vpack.c.bf16 %v2022, %v2022
    %s2024 = scalar_lea.vmem [#allocation12], 128
    %v2025 = vld [vmem:[%s2024] sm:$0xf]
    %v2026 = vld [vmem:[%s2024 + $0x4] sm:$0xf]
    %v2027 = vld [vmem:[%s2024 + $0x8] sm:$0xf]
    %v2028 = vld [vmem:[%s2024 + $0xc] sm:$0xf]
    %v2029 = vld [vmem:[%s2024 + $0x10] sm:$0xf]
    %v2030 = vld [vmem:[%s2024 + $0x14] sm:$0xf]
    %v2031 = vld [vmem:[%s2024 + $0x18] sm:$0xf]
    %v2032 = vld [vmem:[%s2024 + $0x1c] sm:$0xf]
    %v2033 = vld [vmem:[%s2024 + $0x20] sm:$0xf]
    %v2034 = vld [vmem:[%s2024 + $0x24] sm:$0xf]
    %v2035 = vld [vmem:[%s2024 + $0x28] sm:$0xf]
    %v2036 = vld [vmem:[%s2024 + $0x2c] sm:$0xf]
    %v2037 = vld [vmem:[%s2024 + $0x30] sm:$0xf]
    %v2038 = vld [vmem:[%s2024 + $0x34] sm:$0xf]
    %v2039 = vld [vmem:[%s2024 + $0x38] sm:$0xf]
    %v2040 = vld [vmem:[%s2024 + $0x3c] sm:$0xf]
    %s2041 = scalar_lea.vmem %s14, 2
    %v2042 = vld [vmem:[%s2041] sm:$0x1]
    %v2044 = vlaneseq
    %v2045 = vshrl.u32 %v2044, 7
    %v2046 = vsub.s32 0, %v2045
    %v2047 = vrot.slane %v2042, %v2046
    %v2065 = vunpack.c.l.b16 %v2025
    %v2066 = vunpack.c.l.b16 %v2026
    %v2067 = vunpack.c.l.b16 %v2027
    %v2068 = vunpack.c.l.b16 %v2028
    %v2069 = vunpack.c.l.b16 %v2029
    %v2070 = vunpack.c.l.b16 %v2030
    %v2071 = vunpack.c.l.b16 %v2031
    %v2072 = vunpack.c.l.b16 %v2032
    %v2073 = vunpack.c.l.b16 %v2033
    %v2074 = vunpack.c.l.b16 %v2034
    %v2075 = vunpack.c.l.b16 %v2035
    %v2076 = vunpack.c.l.b16 %v2036
    %v2077 = vunpack.c.l.b16 %v2037
    %v2078 = vunpack.c.l.b16 %v2038
    %v2079 = vunpack.c.l.b16 %v2039
    %v2080 = vunpack.c.l.b16 %v2040
    %v2081 = vpack.c.b16 %v2066, %v2065
    %v2082 = vpack.c.b16 %v2068, %v2067
    %v2083 = vpack.c.b16 %v2070, %v2069
    %v2084 = vpack.c.b16 %v2072, %v2071
    %v2085 = vpack.c.b16 %v2074, %v2073
    %v2086 = vpack.c.b16 %v2076, %v2075
    %v2087 = vpack.c.b16 %v2078, %v2077
    %v2088 = vpack.c.b16 %v2080, %v2079
    %2097 = vmatprep.subr.bf16.mxu0 0
    %2098 = vmatpush1.bf16.msra.mxu0 %v2081
    %2099 = vmatprep.subr.bf16.mxu0 0
    %2100 = vmatpush1.bf16.msra.mxu0 %v2082
    %2101 = vmatprep.subr.bf16.mxu0 0
    %2102 = vmatpush1.bf16.msra.mxu0 %v2083
    %2103 = vmatprep.subr.bf16.mxu0 0
    %2104 = vmatpush1.bf16.msra.mxu0 %v2084
    %2105 = vmatprep.subr.bf16.mxu0 0
    %2106 = vmatpush1.bf16.msra.mxu0 %v2085
    %2107 = vmatprep.subr.bf16.mxu0 0
    %2108 = vmatpush1.bf16.msra.mxu0 %v2086
    %2109 = vmatprep.subr.bf16.mxu0 0
    %2110 = vmatpush1.bf16.msra.mxu0 %v2087
    %2111 = vmatprep.subr.bf16.mxu0 0
    %2112 = vmatpush1.bf16.msra.mxu0 %v2088
    %2113 = vmatprep.subr.bf16.mxu0 0
    %2114 = vmatpush1.bf16.msra.mxu0 0
    %2115 = vmatprep.subr.bf16.mxu0 0
    %2116 = vmatpush1.bf16.msra.mxu0 0
    %2117 = vmatprep.subr.bf16.mxu0 0
    %2118 = vmatpush1.bf16.msra.mxu0 0
    %2119 = vmatprep.subr.bf16.mxu0 0
    %2120 = vmatpush1.bf16.msra.mxu0 0
    %2121 = vmatprep.subr.bf16.mxu0 0
    %2122 = vmatpush1.bf16.msra.mxu0 0
    %2123 = vmatprep.subr.bf16.mxu0 0
    %2124 = vmatpush1.bf16.msra.mxu0 0
    %2125 = vmatprep.subr.bf16.mxu0 0
    %2126 = vmatpush1.bf16.msra.mxu0 0
    %2127 = vmatprep.subr.bf16.mxu0 0
    %2128 = vmatpush1.bf16.msra.mxu0 0
    %2129 = vmatprep.mubr.bf16.mxu0 0
    %2130 = vmatmul.mubr.bf16.gmra.mrb[0].mxu0 %v2023
    %v2131 = vpop.f32.mrb[0].mxu0
    %v2132 = vadd.f32 %v2047, %v2131
    %v2133 = vpop.f32.mrb[0].mxu0
    %v2134 = vpop.f32.mrb[0].mxu0
    %v2135 = vpop.f32.mrb[0].mxu0
    %2136 = vdwg.mxu0
    %v2137 = vtanh.pop %v2132
    %s2138 = scalar_lea.vmem [#allocation13], 128
    %v2139 = vld [vmem:[%s2138] sm:$0xf]
    %v2140 = vld [vmem:[%s2138 + $0x4] sm:$0xf]
    %v2141 = vld [vmem:[%s2138 + $0x8] sm:$0xf]
    %v2142 = vld [vmem:[%s2138 + $0xc] sm:$0xf]
    %v2143 = vld [vmem:[%s2138 + $0x10] sm:$0xf]
    %v2144 = vld [vmem:[%s2138 + $0x14] sm:$0xf]
    %v2145 = vld [vmem:[%s2138 + $0x18] sm:$0xf]
    %v2146 = vld [vmem:[%s2138 + $0x1c] sm:$0xf]
    %v2147 = vld [vmem:[%s2138 + $0x20] sm:$0xf]
    %v2148 = vld [vmem:[%s2138 + $0x24] sm:$0xf]
    %v2149 = vld [vmem:[%s2138 + $0x28] sm:$0xf]
    %v2150 = vld [vmem:[%s2138 + $0x2c] sm:$0xf]
    %v2151 = vld [vmem:[%s2138 + $0x30] sm:$0xf]
    %v2152 = vld [vmem:[%s2138 + $0x34] sm:$0xf]
    %v2153 = vld [vmem:[%s2138 + $0x38] sm:$0xf]
    %v2154 = vld [vmem:[%s2138 + $0x3c] sm:$0xf]
    %s2155 = scalar_lea.vmem %s16, 2
    %v2156 = vld [vmem:[%s2155] sm:$0x1]
    %v2158 = vlaneseq
    %v2159 = vshrl.u32 %v2158, 7
    %v2160 = vsub.s32 0, %v2159
    %v2161 = vrot.slane %v2156, %v2160
    %v2179 = vunpack.c.l.b16 %v2139
    %v2180 = vunpack.c.l.b16 %v2140
    %v2181 = vunpack.c.l.b16 %v2141
    %v2182 = vunpack.c.l.b16 %v2142
    %v2183 = vunpack.c.l.b16 %v2143
    %v2184 = vunpack.c.l.b16 %v2144
    %v2185 = vunpack.c.l.b16 %v2145
    %v2186 = vunpack.c.l.b16 %v2146
    %v2187 = vunpack.c.l.b16 %v2147
    %v2188 = vunpack.c.l.b16 %v2148
    %v2189 = vunpack.c.l.b16 %v2149
    %v2190 = vunpack.c.l.b16 %v2150
    %v2191 = vunpack.c.l.b16 %v2151
    %v2192 = vunpack.c.l.b16 %v2152
    %v2193 = vunpack.c.l.b16 %v2153
    %v2194 = vunpack.c.l.b16 %v2154
    %v2195 = vpack.c.b16 %v2180, %v2179
    %v2196 = vpack.c.b16 %v2182, %v2181
    %v2197 = vpack.c.b16 %v2184, %v2183
    %v2198 = vpack.c.b16 %v2186, %v2185
    %v2199 = vpack.c.b16 %v2188, %v2187
    %v2200 = vpack.c.b16 %v2190, %v2189
    %v2201 = vpack.c.b16 %v2192, %v2191
    %v2202 = vpack.c.b16 %v2194, %v2193
    %2211 = vmatprep.subr.bf16.mxu0 0
    %2212 = vmatpush1.bf16.msra.mxu0 %v2195
    %2213 = vmatprep.subr.bf16.mxu0 0
    %2214 = vmatpush1.bf16.msra.mxu0 %v2196
    %2215 = vmatprep.subr.bf16.mxu0 0
    %2216 = vmatpush1.bf16.msra.mxu0 %v2197
    %2217 = vmatprep.subr.bf16.mxu0 0
    %2218 = vmatpush1.bf16.msra.mxu0 %v2198
    %2219 = vmatprep.subr.bf16.mxu0 0
    %2220 = vmatpush1.bf16.msra.mxu0 %v2199
    %2221 = vmatprep.subr.bf16.mxu0 0
    %2222 = vmatpush1.bf16.msra.mxu0 %v2200
    %2223 = vmatprep.subr.bf16.mxu0 0
    %2224 = vmatpush1.bf16.msra.mxu0 %v2201
    %2225 = vmatprep.subr.bf16.mxu0 0
    %2226 = vmatpush1.bf16.msra.mxu0 %v2202
    %2227 = vmatprep.subr.bf16.mxu0 0
    %2228 = vmatpush1.bf16.msra.mxu0 0
    %2229 = vmatprep.subr.bf16.mxu0 0
    %2230 = vmatpush1.bf16.msra.mxu0 0
    %2231 = vmatprep.subr.bf16.mxu0 0
    %2232 = vmatpush1.bf16.msra.mxu0 0
    %2233 = vmatprep.subr.bf16.mxu0 0
    %2234 = vmatpush1.bf16.msra.mxu0 0
    %2235 = vmatprep.subr.bf16.mxu0 0
    %2236 = vmatpush1.bf16.msra.mxu0 0
    %2237 = vmatprep.subr.bf16.mxu0 0
    %2238 = vmatpush1.bf16.msra.mxu0 0
    %2239 = vmatprep.subr.bf16.mxu0 0
    %2240 = vmatpush1.bf16.msra.mxu0 0
    %2241 = vmatprep.subr.bf16.mxu0 0
    %2242 = vmatpush1.bf16.msra.mxu0 0
    %2243 = vmatprep.mubr.bf16.mxu0 0
    %2244 = vmatmul.mubr.bf16.gmra.mrb[0].mxu0 %v2023
    %v2245 = vpop.f32.mrb[0].mxu0
    %v2246 = vadd.f32 %v2161, %v2245
    %v2247 = vpop.f32.mrb[0].mxu0
    %v2248 = vpop.f32.mrb[0].mxu0
    %v2249 = vpop.f32.mrb[0].mxu0
    %2250 = vdwg.mxu0
    %s2251 = scalar_lea.vmem %s17, 2
    %v2252 = vld [vmem:[%s2251] sm:$0x1]
    %v2254 = vlaneseq
    %v2255 = vshrl.u32 %v2254, 7
    %v2256 = vsub.s32 0, %v2255
    %v2257 = vrot.slane %v2252, %v2256
    %v2259 = vadd.f32 %v2137, %v2257
    %v2260 = vmul.f32 %v2259, 1.442695
    %v2261 = vpow.pop %v2260
    %v2262 = vmul.f32 %v1684, %v2261
    %v2263 = vadd.f32 %v2262, %v2246
    %v2264 = vadd.f32 %v1685, %v2137
    %2265 = vadd.xlane.f32.xlu0 %v2264
    %v2266 = vpop.xlane.xlu0 %2265
    %v2267 = vsub.f32 %v537, %v2266
    %v2268 = vld [vmem:[%s18] sm:$0xff]
    %v2269 = vld [vmem:[%s18 + $0x8] sm:$0xff]
    %v2270 = vld [vmem:[%s18 + $0x10] sm:$0xff]
    %v2271 = vld [vmem:[%s18 + $0x18] sm:$0xff]
    %v2272 = vld [vmem:[%s18 + $0x20] sm:$0xff]
    %v2273 = vld [vmem:[%s18 + $0x28] sm:$0xff]
    %v2274 = vld [vmem:[%s18 + $0x30] sm:$0xff]
    %v2275 = vld [vmem:[%s18 + $0x38] sm:$0xff]
    %v2276 = vld [vmem:[%s18 + $0x40] sm:$0xff]
    %v2277 = vld [vmem:[%s18 + $0x48] sm:$0xff]
    %v2278 = vld [vmem:[%s18 + $0x50] sm:$0xff]
    %v2279 = vld [vmem:[%s18 + $0x58] sm:$0xff]
    %v2280 = vld [vmem:[%s18 + $0x60] sm:$0xff]
    %v2281 = vld [vmem:[%s18 + $0x68] sm:$0xff]
    %v2282 = vld [vmem:[%s18 + $0x70] sm:$0xff]
    %v2283 = vld [vmem:[%s18 + $0x78] sm:$0xff]
    %v2284 = vld [vmem:[#allocation15] sm:$0xff]
    %v2285 = vld [vmem:[#allocation15 + $0x8] sm:$0xff]
    %v2286 = vld [vmem:[#allocation15 + $0x10] sm:$0xff]
    %v2287 = vld [vmem:[#allocation15 + $0x18] sm:$0xff]
    %v2288 = vld [vmem:[#allocation15 + $0x20] sm:$0xff]
    %v2289 = vld [vmem:[#allocation15 + $0x28] sm:$0xff]
    %v2290 = vld [vmem:[#allocation15 + $0x30] sm:$0xff]
    %v2291 = vld [vmem:[#allocation15 + $0x38] sm:$0xff]
    %v2292 = vld [vmem:[#allocation15 + $0x40] sm:$0xff]
    %v2293 = vld [vmem:[#allocation15 + $0x48] sm:$0xff]
    %v2294 = vld [vmem:[#allocation15 + $0x50] sm:$0xff]
    %v2295 = vld [vmem:[#allocation15 + $0x58] sm:$0xff]
    %v2296 = vld [vmem:[#allocation15 + $0x60] sm:$0xff]
    %v2297 = vld [vmem:[#allocation15 + $0x68] sm:$0xff]
    %v2298 = vld [vmem:[#allocation15 + $0x70] sm:$0xff]
    %v2299 = vld [vmem:[#allocation15 + $0x78] sm:$0xff]
    %2300 = vmatprep.subr.mxu0 0.0
    %2301 = vmatpush1.msra.mxu0 %v2284
    %2302 = vmatprep.subr.mxu0 0.0
    %2303 = vmatpush1.msra.mxu0 %v2285
    %2304 = vmatprep.subr.mxu0 0.0
    %2305 = vmatpush1.msra.mxu0 %v2286
    %2306 = vmatprep.subr.mxu0 0.0
    %2307 = vmatpush1.msra.mxu0 %v2287
    %2308 = vmatprep.subr.mxu0 0.0
    %2309 = vmatpush1.msra.mxu0 %v2288
    %2310 = vmatprep.subr.mxu0 0.0
    %2311 = vmatpush1.msra.mxu0 %v2289
    %2312 = vmatprep.subr.mxu0 0.0
    %2313 = vmatpush1.msra.mxu0 %v2290
    %2314 = vmatprep.subr.mxu0 0.0
    %2315 = vmatpush1.msra.mxu0 %v2291
    %2316 = vmatprep.subr.mxu0 0.0
    %2317 = vmatpush1.msra.mxu0 %v2292
    %2318 = vmatprep.subr.mxu0 0.0
    %2319 = vmatpush1.msra.mxu0 %v2293
    %2320 = vmatprep.subr.mxu0 0.0
    %2321 = vmatpush1.msra.mxu0 %v2294
    %2322 = vmatprep.subr.mxu0 0.0
    %2323 = vmatpush1.msra.mxu0 %v2295
    %2324 = vmatprep.subr.mxu0 0.0
    %2325 = vmatpush1.msra.mxu0 %v2296
    %2326 = vmatprep.subr.mxu0 0.0
    %2327 = vmatpush1.msra.mxu0 %v2297
    %2328 = vmatprep.subr.mxu0 0.0
    %2329 = vmatpush1.msra.mxu0 %v2298
    %2330 = vmatprep.subr.mxu0 0.0
    %2331 = vmatpush1.msra.mxu0 %v2299
    %2332 = vmatprep.subr.mxu0 0.0
    %2333 = vmatpush1.msra.mxu0 0.0
    %2334 = vmatprep.subr.mxu0 0.0
    %2335 = vmatpush1.msra.mxu0 0.0
    %2336 = vmatprep.subr.mxu0 0.0
    %2337 = vmatpush1.msra.mxu0 0.0
    %2338 = vmatprep.subr.mxu0 0.0
    %2339 = vmatpush1.msra.mxu0 0.0
    %2340 = vmatprep.subr.mxu0 0.0
    %2341 = vmatpush1.msra.mxu0 0.0
    %2342 = vmatprep.subr.mxu0 0.0
    %2343 = vmatpush1.msra.mxu0 0.0
    %2344 = vmatprep.subr.mxu0 0.0
    %2345 = vmatpush1.msra.mxu0 0.0
    %2346 = vmatprep.subr.mxu0 0.0
    %2347 = vmatpush1.msra.mxu0 0.0
    %2348 = vmatprep.subr.mxu0 0.0
    %2349 = vmatpush1.msra.mxu0 0.0
    %2350 = vmatprep.subr.mxu0 0.0
    %2351 = vmatpush1.msra.mxu0 0.0
    %2352 = vmatprep.subr.mxu0 0.0
    %2353 = vmatpush1.msra.mxu0 0.0
    %2354 = vmatprep.subr.mxu0 0.0
    %2355 = vmatpush1.msra.mxu0 0.0
    %2356 = vmatprep.subr.mxu0 0.0
    %2357 = vmatpush1.msra.mxu0 0.0
    %2358 = vmatprep.subr.mxu0 0.0
    %2359 = vmatpush1.msra.mxu0 0.0
    %2360 = vmatprep.subr.mxu0 0.0
    %2361 = vmatpush1.msra.mxu0 0.0
    %2362 = vmatprep.subr.mxu0 0.0
    %2363 = vmatpush1.msra.mxu0 0.0
    %2364 = vmatprep.mubr.f32.mxu0 0.0
    %2365 = vmatmul.mubr.f32.gmra.mrb[0].mxu0 %v190
    %v2366 = vpop.f32.mrb[0].mxu0
    %v2367 = vadd.f32 0.0, %v2366
    %v2368 = vpop.f32.mrb[0].mxu0
    %2369 = vdwg.mxu0
    %2370 = vmatprep.subr.mxu0 0.0
    %2371 = vmatpush1.msra.mxu0 %v2268
    %2372 = vmatprep.subr.mxu0 0.0
    %2373 = vmatpush1.msra.mxu0 %v2269
    %2374 = vmatprep.subr.mxu0 0.0
    %2375 = vmatpush1.msra.mxu0 %v2270
    %2376 = vmatprep.subr.mxu0 0.0
    %2377 = vmatpush1.msra.mxu0 %v2271
    %2378 = vmatprep.subr.mxu0 0.0
    %2379 = vmatpush1.msra.mxu0 %v2272
    %2380 = vmatprep.subr.mxu0 0.0
    %2381 = vmatpush1.msra.mxu0 %v2273
    %2382 = vmatprep.subr.mxu0 0.0
    %2383 = vmatpush1.msra.mxu0 %v2274
    %2384 = vmatprep.subr.mxu0 0.0
    %2385 = vmatpush1.msra.mxu0 %v2275
    %2386 = vmatprep.subr.mxu0 0.0
    %2387 = vmatpush1.msra.mxu0 %v2276
    %2388 = vmatprep.subr.mxu0 0.0
    %2389 = vmatpush1.msra.mxu0 %v2277
    %2390 = vmatprep.subr.mxu0 0.0
    %2391 = vmatpush1.msra.mxu0 %v2278
    %2392 = vmatprep.subr.mxu0 0.0
    %2393 = vmatpush1.msra.mxu0 %v2279
    %2394 = vmatprep.subr.mxu0 0.0
    %2395 = vmatpush1.msra.mxu0 %v2280
    %2396 = vmatprep.subr.mxu0 0.0
    %2397 = vmatpush1.msra.mxu0 %v2281
    %2398 = vmatprep.subr.mxu0 0.0
    %2399 = vmatpush1.msra.mxu0 %v2282
    %2400 = vmatprep.subr.mxu0 0.0
    %2401 = vmatpush1.msra.mxu0 %v2283
    %2402 = vmatprep.subr.mxu0 0.0
    %2403 = vmatpush1.msra.mxu0 0.0
    %2404 = vmatprep.subr.mxu0 0.0
    %2405 = vmatpush1.msra.mxu0 0.0
    %2406 = vmatprep.subr.mxu0 0.0
    %2407 = vmatpush1.msra.mxu0 0.0
    %2408 = vmatprep.subr.mxu0 0.0
    %2409 = vmatpush1.msra.mxu0 0.0
    %2410 = vmatprep.subr.mxu0 0.0
    %2411 = vmatpush1.msra.mxu0 0.0
    %2412 = vmatprep.subr.mxu0 0.0
    %2413 = vmatpush1.msra.mxu0 0.0
    %2414 = vmatprep.subr.mxu0 0.0
    %2415 = vmatpush1.msra.mxu0 0.0
    %2416 = vmatprep.subr.mxu0 0.0
    %2417 = vmatpush1.msra.mxu0 0.0
    %2418 = vmatprep.subr.mxu0 0.0
    %2419 = vmatpush1.msra.mxu0 0.0
    %2420 = vmatprep.subr.mxu0 0.0
    %2421 = vmatpush1.msra.mxu0 0.0
    %2422 = vmatprep.subr.mxu0 0.0
    %2423 = vmatpush1.msra.mxu0 0.0
    %2424 = vmatprep.subr.mxu0 0.0
    %2425 = vmatpush1.msra.mxu0 0.0
    %2426 = vmatprep.subr.mxu0 0.0
    %2427 = vmatpush1.msra.mxu0 0.0
    %2428 = vmatprep.subr.mxu0 0.0
    %2429 = vmatpush1.msra.mxu0 0.0
    %2430 = vmatprep.subr.mxu0 0.0
    %2431 = vmatpush1.msra.mxu0 0.0
    %2432 = vmatprep.subr.mxu0 0.0
    %2433 = vmatpush1.msra.mxu0 0.0
    %2434 = vmatprep.mubr.f32.mxu0 0.0
    %2435 = vmatmul.mubr.f32.gmra.mrb[0].mxu0 %v2263
    %v2436 = vpop.f32.mrb[0].mxu0
    %v2437 = vadd.f32 %v2367, %v2436
    %v2438 = vpop.f32.mrb[0].mxu0
    %2439 = vdwg.mxu0
    %2440 = vst [vmem:[%s20] sm:$0xff] %v2437
    %2441 = vst [vmem:[%s21] sm:$0xff] %v2267
    // Predicated region
    $region118: #{_forward_impl.1} parent=1 // pred_check
      _
    $region119: #{_forward_impl.1} parent=1 // pred_check_branch
      %2443 = sbr.rel (0) target = $region121
    $region120: #{_forward_impl.1} parent=1 // pred_region
      _
    $region121: #{_forward_impl.1} parent=1 // pred_fallthru
      _
    // Predicated region
    $region122: #{_forward_impl.1} parent=1 // pred_check
      _
    $region123: #{_forward_impl.1} parent=1 // pred_check_branch
      %2445 = sbr.rel (0) target = $region125
    $region124: #{_forward_impl.1} parent=1 // pred_region
      _
    $region125: #{_forward_impl.1} parent=1 // pred_fallthru
      _
    // Predicated region
    $region126: #{_forward_impl.1} parent=1 // pred_check
      _
    $region127: #{_forward_impl.1} parent=1 // pred_check_branch
      %2447 = sbr.rel (0) target = $region129
    $region128: #{_forward_impl.1} parent=1 // pred_region
      _
    $region129: #{_forward_impl.1} parent=1 // pred_fallthru
      _
    // Predicated region
    $region130: #{_forward_impl.1} parent=1 // pred_check
      _
    $region131: #{_forward_impl.1} parent=1 // pred_check_branch
      %2449 = sbr.rel (0) target = $region133
    $region132: #{_forward_impl.1} parent=1 // pred_region
      _
    $region133: #{_forward_impl.1} parent=1 // pred_fallthru
      _
    %2450 = vsyncpa [#allocation3], 1
    %2451 = vsyncpa [#allocation5], 1
    %2452 = vsyncpa [#allocation8], 1
    %2453 = vsyncpa [#allocation11], 1
    %2454 = vsyncpa [#allocation14], 1

</llo_original>
